<compile_context>
chip_gen: v6e
topology: v6e:2x2x1
jax: 0.10.0
libtpu: 0.0.40
codegen_flags: <defaults>
</compile_context>

<pallas_src>
import functools

import jax
import jax.numpy as jnp
from jax.experimental import pallas as pl
from jax.experimental.pallas import tpu as pltpu


def lstm_classifier_kernel(x_ref, wih_ref, bias_ref, whh_ref, wcls_ref,
                           bcls_ref, out_ref, hseq_ref):
    """Fused input projection + LSTM recurrence (last batch row) + classifier.

    x_ref    : (seq, I)    last-batch-row inputs
    wih_ref  : (I, 4H)     W_ih^T           (torch gate order i, f, g, o)
    bias_ref : (1, 4H)     b_ih + b_hh
    whh_ref  : (H, 4H)     W_hh^T
    wcls_ref : (H, 128)    classifier weight^T, zero-padded on lanes
    bcls_ref : (1, 128)    classifier bias, zero-padded on lanes
    out_ref  : (seq, 128)  lane-dense logits slab (first C lanes valid)
    hseq_ref : (seq, H)    VMEM scratch holding h_t for all timesteps
    """
    H = whh_ref.shape[0]
    seq = x_ref.shape[0]

    # Fused, hoisted input projection: one MXU matmul covering all timesteps.
    x_proj = (jnp.dot(x_ref[...], wih_ref[...],
                      preferred_element_type=jnp.float32)
              + bias_ref[...])                                   # (seq, 4H)

    w_hh = whh_ref[...]                                          # (H, 4H)
    h = jnp.zeros((1, H), jnp.float32)
    c = jnp.zeros((1, H), jnp.float32)

    # seq is tiny and static -> unrolled; h/c stay in vregs (no scratch).
    # (Mosaic keeps w_hh resident in VMEM; explicit matmul_push_rhs skipped.)
    for t in range(seq):
        gates = x_proj[t:t + 1, :] + jnp.dot(
            h, w_hh, preferred_element_type=jnp.float32)         # (1, 4H)

        # Slice at 128-lane-aligned boundaries BEFORE activating:
        # one sigmoid over (i, f), one tanh over g, one sigmoid over o.
        sig_if = jax.nn.sigmoid(gates[:, 0:2 * H])               # (1, 2H)
        i_g = sig_if[:, 0:H]
        f_g = sig_if[:, H:2 * H]
        g_g = jnp.tanh(gates[:, 2 * H:3 * H])
        o_g = jax.nn.sigmoid(gates[:, 3 * H:4 * H])

        c = f_g * c + i_g * g_g
        h = o_g * jnp.tanh(c)

        # Direct row write into VMEM scratch (no concatenate relayout).
        hseq_ref[pl.ds(t, 1), :] = h

    # One lane-dense matmul + one unmasked store.
    out_ref[...] = (jnp.dot(hseq_ref[...], wcls_ref[...],
                            preferred_element_type=jnp.float32)
                    + bcls_ref[...])


def prepare_weights(w_ih, w_hh, b_ih, b_hh, w_cls, b_cls, c_pad=128):
    """Data-independent weight transforms, done ONCE at init (not per call)."""
    H = w_hh.shape[1]
    C = w_cls.shape[0]
    w_ih_t = jnp.asarray(w_ih.T, jnp.float32)                    # (I, 4H)
    bias = jnp.asarray(b_ih + b_hh, jnp.float32)[None, :]        # (1, 4H)
    w_hh_t = jnp.asarray(w_hh.T, jnp.float32)                    # (H, 4H)
    w_cls_pad = jnp.zeros((H, c_pad), jnp.float32).at[:, :C].set(
        jnp.asarray(w_cls.T, jnp.float32))                       # (H, 128)
    b_cls_pad = jnp.zeros((1, c_pad), jnp.float32).at[:, :C].set(
        jnp.asarray(b_cls, jnp.float32))                         # (1, 128)
    return w_ih_t, bias, w_hh_t, w_cls_pad, b_cls_pad


@functools.partial(jax.jit, static_argnames="num_classes")
def simple_lstm_forward(x, w_ih_t, bias, w_hh_t, w_cls_pad, b_cls_pad,
                        *, num_classes):
    """x: (D0, input_size, D1) — same layout the torch module is called with."""
    x = x.astype(jnp.float32)
    seq = x.shape[0]
    H = w_hh_t.shape[0]
    c_pad = w_cls_pad.shape[1]

    # Only the last "batch" row feeds out[:, -1]; the recurrence is
    # independent per row, so drop the rest (pure algorithmic reduction).
    x_last = x[:, :, -1]                                          # (seq, I)

    vmem = pl.BlockSpec(memory_space=pltpu.MemorySpace.VMEM)
    out = pl.pallas_call(
        lstm_classifier_kernel,
        out_shape=jax.ShapeDtypeStruct((seq, c_pad), jnp.float32),
        in_specs=[vmem] * 6,
        out_specs=vmem,
        scratch_shapes=[pltpu.VMEM((seq, H), jnp.float32)],
    )(x_last, w_ih_t, bias, w_hh_t, w_cls_pad, b_cls_pad)

    return out[:, :num_classes]


def _ref_forward(x, w_ih, w_hh, b_ih, b_hh, w_cls, b_cls):
    """Pure-JAX reference mirroring the torch module exactly (full batch)."""
    xp = jnp.transpose(x, (0, 2, 1)).astype(jnp.float32)
    seq, B, _ = xp.shape
    H = w_hh.shape[1]
    h = jnp.zeros((B, H), jnp.float32)
    c = jnp.zeros((B, H), jnp.float32)
    outs = []
    for t in range(seq):
        g = xp[t] @ w_ih.T + b_ih + h @ w_hh.T + b_hh
        i = jax.nn.sigmoid(g[:, :H])
        f = jax.nn.sigmoid(g[:, H:2 * H])
        gg = jnp.tanh(g[:, 2 * H:3 * H])
        o = jax.nn.sigmoid(g[:, 3 * H:])
        c = f * c + i * gg
        h = o * jnp.tanh(c)
        outs.append(h)
    out = jnp.stack(outs)          # (seq, B, H)
    last = out[:, -1]              # (seq, H)  == torch out[:, -1]
    return last @ w_cls.T + b_cls


if __name__ == "__main__":
    # Module defaults: hidden=128, num_classes=2; small input_size=16,
    # x = (seq=8, input_size=16, D1=4).
    I, H, C = 16, 128, 2
    key = jax.random.PRNGKey(0)
    ks = jax.random.split(key, 7)
    bound = 1.0 / float(jnp.sqrt(H))

    w_ih = jax.random.uniform(ks[0], (4 * H, I), jnp.float32, -bound, bound)
    w_hh = jax.random.uniform(ks[1], (4 * H, H), jnp.float32, -bound, bound)
    b_ih = jax.random.uniform(ks[2], (4 * H,), jnp.float32, -bound, bound)
    b_hh = jax.random.uniform(ks[3], (4 * H,), jnp.float32, -bound, bound)
    w_cls = jax.random.uniform(ks[4], (C, H), jnp.float32, -bound, bound)
    b_cls = jax.random.uniform(ks[5], (C,), jnp.float32, -bound, bound)

    x = jax.random.normal(ks[6], (8, I, 4), jnp.float32)

    # Weight transforms computed once (init-time), reused across calls.
    params = prepare_weights(w_ih, w_hh, b_ih, b_hh, w_cls, b_cls)

    out = simple_lstm_forward(x, *params, num_classes=C)
    out = jax.block_until_ready(out)

    ref = _ref_forward(x, w_ih, w_hh, b_ih, b_hh, w_cls, b_cls)
    assert out.shape == (8, C), out.shape
    assert jnp.allclose(out, ref, atol=1e-4, rtol=1e-4), (out, ref)

    print("KERNEL_OK")
</pallas_src>

<mosaic_0001>
module attributes {stable_mosaic.version = 11 : i64} {
  func.func @lstm_classifier_kernel(%arg0: memref<8x16xf32, #tpu.memory_space<vmem>>, %arg1: memref<16x512xf32, #tpu.memory_space<vmem>>, %arg2: memref<1x512xf32, #tpu.memory_space<vmem>>, %arg3: memref<128x512xf32, #tpu.memory_space<vmem>>, %arg4: memref<128x128xf32, #tpu.memory_space<vmem>>, %arg5: memref<1x128xf32, #tpu.memory_space<vmem>>, %arg6: memref<8x128xf32, #tpu.memory_space<vmem>>, %arg7: memref<8x128xf32, #tpu.memory_space<vmem>>) attributes {dimension_semantics = [], scalar_prefetch = 0 : i64, scratch_operands = 1 : i64, tpu.core_type = #tpu.core_type<tc>} {
    %c0 = arith.constant 0 : index
    %c0_0 = arith.constant 0 : index
    %0 = vector.load %arg0[%c0, %c0_0] : memref<8x16xf32, #tpu.memory_space<vmem>>, vector<8x16xf32>
    %c0_1 = arith.constant 0 : index
    %c0_2 = arith.constant 0 : index
    %1 = vector.load %arg1[%c0_1, %c0_2] : memref<16x512xf32, #tpu.memory_space<vmem>>, vector<16x512xf32>
    %cst = arith.constant dense<0.000000e+00> : vector<8x512xf32>
    %2 = tpu.matmul %0, %1, %cst {dimension_numbers = #tpu.dot_dimension_numbers<[1], [0], [0], [1], [0, 0, 1, 1], [], []>} : vector<8x16xf32>, vector<16x512xf32>, vector<8x512xf32> -> vector<8x512xf32>
    %c0_3 = arith.constant 0 : index
    %c0_4 = arith.constant 0 : index
    %3 = vector.load %arg2[%c0_3, %c0_4] : memref<1x512xf32, #tpu.memory_space<vmem>>, vector<1x512xf32>
    %4 = vector.broadcast %3 : vector<1x512xf32> to vector<8x512xf32>
    %5 = arith.addf %2, %4 : vector<8x512xf32>
    %c0_5 = arith.constant 0 : index
    %c0_6 = arith.constant 0 : index
    %6 = vector.load %arg3[%c0_5, %c0_6] : memref<128x512xf32, #tpu.memory_space<vmem>>, vector<128x512xf32>
    %cst_7 = arith.constant 0.000000e+00 : f32
    %7 = vector.broadcast %cst_7 : f32 to vector<1x128xf32>
    %cst_8 = arith.constant 0.000000e+00 : f32
    %8 = vector.broadcast %cst_8 : f32 to vector<1x128xf32>
    %9 = vector.extract_strided_slice %5 {offsets = [0, 0], sizes = [1, 512], strides = [1, 1]} : vector<8x512xf32> to vector<1x512xf32>
    %cst_9 = arith.constant dense<0.000000e+00> : vector<1x512xf32>
    %10 = tpu.matmul %7, %6, %cst_9 {dimension_numbers = #tpu.dot_dimension_numbers<[1], [0], [0], [1], [0, 0, 1, 1], [], []>} : vector<1x128xf32>, vector<128x512xf32>, vector<1x512xf32> -> vector<1x512xf32>
    %11 = arith.addf %9, %10 : vector<1x512xf32>
    %12 = vector.extract_strided_slice %11 {offsets = [0, 0], sizes = [1, 256], strides = [1, 1]} : vector<1x512xf32> to vector<1x256xf32>
    %13 = arith.negf %12 : vector<1x256xf32>
    %14 = math.exp %13 : vector<1x256xf32>
    %cst_10 = arith.constant 1.000000e+00 : f32
    %15 = vector.broadcast %cst_10 : f32 to vector<1x256xf32>
    %16 = arith.addf %15, %14 : vector<1x256xf32>
    %17 = arith.divf %15, %16 : vector<1x256xf32>
    %18 = vector.extract_strided_slice %17 {offsets = [0, 0], sizes = [1, 128], strides = [1, 1]} : vector<1x256xf32> to vector<1x128xf32>
    %19 = vector.extract_strided_slice %17 {offsets = [0, 128], sizes = [1, 128], strides = [1, 1]} : vector<1x256xf32> to vector<1x128xf32>
    %20 = vector.extract_strided_slice %11 {offsets = [0, 256], sizes = [1, 128], strides = [1, 1]} : vector<1x512xf32> to vector<1x128xf32>
    %21 = math.tanh %20 : vector<1x128xf32>
    %22 = vector.extract_strided_slice %11 {offsets = [0, 384], sizes = [1, 128], strides = [1, 1]} : vector<1x512xf32> to vector<1x128xf32>
    %23 = arith.negf %22 : vector<1x128xf32>
    %24 = math.exp %23 : vector<1x128xf32>
    %cst_11 = arith.constant 1.000000e+00 : f32
    %25 = vector.broadcast %cst_11 : f32 to vector<1x128xf32>
    %26 = arith.addf %25, %24 : vector<1x128xf32>
    %27 = arith.divf %25, %26 : vector<1x128xf32>
    %28 = arith.mulf %19, %8 : vector<1x128xf32>
    %29 = arith.mulf %18, %21 : vector<1x128xf32>
    %30 = arith.addf %28, %29 : vector<1x128xf32>
    %31 = math.tanh %30 : vector<1x128xf32>
    %32 = arith.mulf %27, %31 : vector<1x128xf32>
    %c0_12 = arith.constant 0 : index
    %c0_13 = arith.constant 0 : index
    %33 = vector.load %arg7[%c0_12, %c0_13] : memref<8x128xf32, #tpu.memory_space<vmem>>, vector<1x128xf32>
    tpu.vector_store %arg7[%c0_12, %c0_13], %32 {strides = array<i32>} : memref<8x128xf32, #tpu.memory_space<vmem>>, vector<1x128xf32>,
    %34 = vector.extract_strided_slice %5 {offsets = [1, 0], sizes = [1, 512], strides = [1, 1]} : vector<8x512xf32> to vector<1x512xf32>
    %cst_14 = arith.constant dense<0.000000e+00> : vector<1x512xf32>
    %35 = tpu.matmul %32, %6, %cst_14 {dimension_numbers = #tpu.dot_dimension_numbers<[1], [0], [0], [1], [0, 0, 1, 1], [], []>} : vector<1x128xf32>, vector<128x512xf32>, vector<1x512xf32> -> vector<1x512xf32>
    %36 = arith.addf %34, %35 : vector<1x512xf32>
    %37 = vector.extract_strided_slice %36 {offsets = [0, 0], sizes = [1, 256], strides = [1, 1]} : vector<1x512xf32> to vector<1x256xf32>
    %38 = arith.negf %37 : vector<1x256xf32>
    %39 = math.exp %38 : vector<1x256xf32>
    %cst_15 = arith.constant 1.000000e+00 : f32
    %40 = vector.broadcast %cst_15 : f32 to vector<1x256xf32>
    %41 = arith.addf %40, %39 : vector<1x256xf32>
    %42 = arith.divf %40, %41 : vector<1x256xf32>
    %43 = vector.extract_strided_slice %42 {offsets = [0, 0], sizes = [1, 128], strides = [1, 1]} : vector<1x256xf32> to vector<1x128xf32>
    %44 = vector.extract_strided_slice %42 {offsets = [0, 128], sizes = [1, 128], strides = [1, 1]} : vector<1x256xf32> to vector<1x128xf32>
    %45 = vector.extract_strided_slice %36 {offsets = [0, 256], sizes = [1, 128], strides = [1, 1]} : vector<1x512xf32> to vector<1x128xf32>
    %46 = math.tanh %45 : vector<1x128xf32>
    %47 = vector.extract_strided_slice %36 {offsets = [0, 384], sizes = [1, 128], strides = [1, 1]} : vector<1x512xf32> to vector<1x128xf32>
    %48 = arith.negf %47 : vector<1x128xf32>
    %49 = math.exp %48 : vector<1x128xf32>
    %cst_16 = arith.constant 1.000000e+00 : f32
    %50 = vector.broadcast %cst_16 : f32 to vector<1x128xf32>
    %51 = arith.addf %50, %49 : vector<1x128xf32>
    %52 = arith.divf %50, %51 : vector<1x128xf32>
    %53 = arith.mulf %44, %30 : vector<1x128xf32>
    %54 = arith.mulf %43, %46 : vector<1x128xf32>
    %55 = arith.addf %53, %54 : vector<1x128xf32>
    %56 = math.tanh %55 : vector<1x128xf32>
    %57 = arith.mulf %52, %56 : vector<1x128xf32>
    %c1 = arith.constant 1 : index
    %c0_17 = arith.constant 0 : index
    %58 = vector.load %arg7[%c1, %c0_17] : memref<8x128xf32, #tpu.memory_space<vmem>>, vector<1x128xf32>
    tpu.vector_store %arg7[%c1, %c0_17], %57 {strides = array<i32>} : memref<8x128xf32, #tpu.memory_space<vmem>>, vector<1x128xf32>,
    %59 = vector.extract_strided_slice %5 {offsets = [2, 0], sizes = [1, 512], strides = [1, 1]} : vector<8x512xf32> to vector<1x512xf32>
    %cst_18 = arith.constant dense<0.000000e+00> : vector<1x512xf32>
    %60 = tpu.matmul %57, %6, %cst_18 {dimension_numbers = #tpu.dot_dimension_numbers<[1], [0], [0], [1], [0, 0, 1, 1], [], []>} : vector<1x128xf32>, vector<128x512xf32>, vector<1x512xf32> -> vector<1x512xf32>
    %61 = arith.addf %59, %60 : vector<1x512xf32>
    %62 = vector.extract_strided_slice %61 {offsets = [0, 0], sizes = [1, 256], strides = [1, 1]} : vector<1x512xf32> to vector<1x256xf32>
    %63 = arith.negf %62 : vector<1x256xf32>
    %64 = math.exp %63 : vector<1x256xf32>
    %cst_19 = arith.constant 1.000000e+00 : f32
    %65 = vector.broadcast %cst_19 : f32 to vector<1x256xf32>
    %66 = arith.addf %65, %64 : vector<1x256xf32>
    %67 = arith.divf %65, %66 : vector<1x256xf32>
    %68 = vector.extract_strided_slice %67 {offsets = [0, 0], sizes = [1, 128], strides = [1, 1]} : vector<1x256xf32> to vector<1x128xf32>
    %69 = vector.extract_strided_slice %67 {offsets = [0, 128], sizes = [1, 128], strides = [1, 1]} : vector<1x256xf32> to vector<1x128xf32>
    %70 = vector.extract_strided_slice %61 {offsets = [0, 256], sizes = [1, 128], strides = [1, 1]} : vector<1x512xf32> to vector<1x128xf32>
    %71 = math.tanh %70 : vector<1x128xf32>
    %72 = vector.extract_strided_slice %61 {offsets = [0, 384], sizes = [1, 128], strides = [1, 1]} : vector<1x512xf32> to vector<1x128xf32>
    %73 = arith.negf %72 : vector<1x128xf32>
    %74 = math.exp %73 : vector<1x128xf32>
    %cst_20 = arith.constant 1.000000e+00 : f32
    %75 = vector.broadcast %cst_20 : f32 to vector<1x128xf32>
    %76 = arith.addf %75, %74 : vector<1x128xf32>
    %77 = arith.divf %75, %76 : vector<1x128xf32>
    %78 = arith.mulf %69, %55 : vector<1x128xf32>
    %79 = arith.mulf %68, %71 : vector<1x128xf32>
    %80 = arith.addf %78, %79 : vector<1x128xf32>
    %81 = math.tanh %80 : vector<1x128xf32>
    %82 = arith.mulf %77, %81 : vector<1x128xf32>
    %c2 = arith.constant 2 : index
    %c0_21 = arith.constant 0 : index
    %83 = vector.load %arg7[%c2, %c0_21] : memref<8x128xf32, #tpu.memory_space<vmem>>, vector<1x128xf32>
    tpu.vector_store %arg7[%c2, %c0_21], %82 {strides = array<i32>} : memref<8x128xf32, #tpu.memory_space<vmem>>, vector<1x128xf32>,
    %84 = vector.extract_strided_slice %5 {offsets = [3, 0], sizes = [1, 512], strides = [1, 1]} : vector<8x512xf32> to vector<1x512xf32>
    %cst_22 = arith.constant dense<0.000000e+00> : vector<1x512xf32>
    %85 = tpu.matmul %82, %6, %cst_22 {dimension_numbers = #tpu.dot_dimension_numbers<[1], [0], [0], [1], [0, 0, 1, 1], [], []>} : vector<1x128xf32>, vector<128x512xf32>, vector<1x512xf32> -> vector<1x512xf32>
    %86 = arith.addf %84, %85 : vector<1x512xf32>
    %87 = vector.extract_strided_slice %86 {offsets = [0, 0], sizes = [1, 256], strides = [1, 1]} : vector<1x512xf32> to vector<1x256xf32>
    %88 = arith.negf %87 : vector<1x256xf32>
    %89 = math.exp %88 : vector<1x256xf32>
    %cst_23 = arith.constant 1.000000e+00 : f32
    %90 = vector.broadcast %cst_23 : f32 to vector<1x256xf32>
    %91 = arith.addf %90, %89 : vector<1x256xf32>
    %92 = arith.divf %90, %91 : vector<1x256xf32>
    %93 = vector.extract_strided_slice %92 {offsets = [0, 0], sizes = [1, 128], strides = [1, 1]} : vector<1x256xf32> to vector<1x128xf32>
    %94 = vector.extract_strided_slice %92 {offsets = [0, 128], sizes = [1, 128], strides = [1, 1]} : vector<1x256xf32> to vector<1x128xf32>
    %95 = vector.extract_strided_slice %86 {offsets = [0, 256], sizes = [1, 128], strides = [1, 1]} : vector<1x512xf32> to vector<1x128xf32>
    %96 = math.tanh %95 : vector<1x128xf32>
    %97 = vector.extract_strided_slice %86 {offsets = [0, 384], sizes = [1, 128], strides = [1, 1]} : vector<1x512xf32> to vector<1x128xf32>
    %98 = arith.negf %97 : vector<1x128xf32>
    %99 = math.exp %98 : vector<1x128xf32>
    %cst_24 = arith.constant 1.000000e+00 : f32
    %100 = vector.broadcast %cst_24 : f32 to vector<1x128xf32>
    %101 = arith.addf %100, %99 : vector<1x128xf32>
    %102 = arith.divf %100, %101 : vector<1x128xf32>
    %103 = arith.mulf %94, %80 : vector<1x128xf32>
    %104 = arith.mulf %93, %96 : vector<1x128xf32>
    %105 = arith.addf %103, %104 : vector<1x128xf32>
    %106 = math.tanh %105 : vector<1x128xf32>
    %107 = arith.mulf %102, %106 : vector<1x128xf32>
    %c3 = arith.constant 3 : index
    %c0_25 = arith.constant 0 : index
    %108 = vector.load %arg7[%c3, %c0_25] : memref<8x128xf32, #tpu.memory_space<vmem>>, vector<1x128xf32>
    tpu.vector_store %arg7[%c3, %c0_25], %107 {strides = array<i32>} : memref<8x128xf32, #tpu.memory_space<vmem>>, vector<1x128xf32>,
    %109 = vector.extract_strided_slice %5 {offsets = [4, 0], sizes = [1, 512], strides = [1, 1]} : vector<8x512xf32> to vector<1x512xf32>
    %cst_26 = arith.constant dense<0.000000e+00> : vector<1x512xf32>
    %110 = tpu.matmul %107, %6, %cst_26 {dimension_numbers = #tpu.dot_dimension_numbers<[1], [0], [0], [1], [0, 0, 1, 1], [], []>} : vector<1x128xf32>, vector<128x512xf32>, vector<1x512xf32> -> vector<1x512xf32>
    %111 = arith.addf %109, %110 : vector<1x512xf32>
    %112 = vector.extract_strided_slice %111 {offsets = [0, 0], sizes = [1, 256], strides = [1, 1]} : vector<1x512xf32> to vector<1x256xf32>
    %113 = arith.negf %112 : vector<1x256xf32>
    %114 = math.exp %113 : vector<1x256xf32>
    %cst_27 = arith.constant 1.000000e+00 : f32
    %115 = vector.broadcast %cst_27 : f32 to vector<1x256xf32>
    %116 = arith.addf %115, %114 : vector<1x256xf32>
    %117 = arith.divf %115, %116 : vector<1x256xf32>
    %118 = vector.extract_strided_slice %117 {offsets = [0, 0], sizes = [1, 128], strides = [1, 1]} : vector<1x256xf32> to vector<1x128xf32>
    %119 = vector.extract_strided_slice %117 {offsets = [0, 128], sizes = [1, 128], strides = [1, 1]} : vector<1x256xf32> to vector<1x128xf32>
    %120 = vector.extract_strided_slice %111 {offsets = [0, 256], sizes = [1, 128], strides = [1, 1]} : vector<1x512xf32> to vector<1x128xf32>
    %121 = math.tanh %120 : vector<1x128xf32>
    %122 = vector.extract_strided_slice %111 {offsets = [0, 384], sizes = [1, 128], strides = [1, 1]} : vector<1x512xf32> to vector<1x128xf32>
    %123 = arith.negf %122 : vector<1x128xf32>
    %124 = math.exp %123 : vector<1x128xf32>
    %cst_28 = arith.constant 1.000000e+00 : f32
    %125 = vector.broadcast %cst_28 : f32 to vector<1x128xf32>
    %126 = arith.addf %125, %124 : vector<1x128xf32>
    %127 = arith.divf %125, %126 : vector<1x128xf32>
    %128 = arith.mulf %119, %105 : vector<1x128xf32>
    %129 = arith.mulf %118, %121 : vector<1x128xf32>
    %130 = arith.addf %128, %129 : vector<1x128xf32>
    %131 = math.tanh %130 : vector<1x128xf32>
    %132 = arith.mulf %127, %131 : vector<1x128xf32>
    %c4 = arith.constant 4 : index
    %c0_29 = arith.constant 0 : index
    %133 = vector.load %arg7[%c4, %c0_29] : memref<8x128xf32, #tpu.memory_space<vmem>>, vector<1x128xf32>
    tpu.vector_store %arg7[%c4, %c0_29], %132 {strides = array<i32>} : memref<8x128xf32, #tpu.memory_space<vmem>>, vector<1x128xf32>,
    %134 = vector.extract_strided_slice %5 {offsets = [5, 0], sizes = [1, 512], strides = [1, 1]} : vector<8x512xf32> to vector<1x512xf32>
    %cst_30 = arith.constant dense<0.000000e+00> : vector<1x512xf32>
    %135 = tpu.matmul %132, %6, %cst_30 {dimension_numbers = #tpu.dot_dimension_numbers<[1], [0], [0], [1], [0, 0, 1, 1], [], []>} : vector<1x128xf32>, vector<128x512xf32>, vector<1x512xf32> -> vector<1x512xf32>
    %136 = arith.addf %134, %135 : vector<1x512xf32>
    %137 = vector.extract_strided_slice %136 {offsets = [0, 0], sizes = [1, 256], strides = [1, 1]} : vector<1x512xf32> to vector<1x256xf32>
    %138 = arith.negf %137 : vector<1x256xf32>
    %139 = math.exp %138 : vector<1x256xf32>
    %cst_31 = arith.constant 1.000000e+00 : f32
    %140 = vector.broadcast %cst_31 : f32 to vector<1x256xf32>
    %141 = arith.addf %140, %139 : vector<1x256xf32>
    %142 = arith.divf %140, %141 : vector<1x256xf32>
    %143 = vector.extract_strided_slice %142 {offsets = [0, 0], sizes = [1, 128], strides = [1, 1]} : vector<1x256xf32> to vector<1x128xf32>
    %144 = vector.extract_strided_slice %142 {offsets = [0, 128], sizes = [1, 128], strides = [1, 1]} : vector<1x256xf32> to vector<1x128xf32>
    %145 = vector.extract_strided_slice %136 {offsets = [0, 256], sizes = [1, 128], strides = [1, 1]} : vector<1x512xf32> to vector<1x128xf32>
    %146 = math.tanh %145 : vector<1x128xf32>
    %147 = vector.extract_strided_slice %136 {offsets = [0, 384], sizes = [1, 128], strides = [1, 1]} : vector<1x512xf32> to vector<1x128xf32>
    %148 = arith.negf %147 : vector<1x128xf32>
    %149 = math.exp %148 : vector<1x128xf32>
    %cst_32 = arith.constant 1.000000e+00 : f32
    %150 = vector.broadcast %cst_32 : f32 to vector<1x128xf32>
    %151 = arith.addf %150, %149 : vector<1x128xf32>
    %152 = arith.divf %150, %151 : vector<1x128xf32>
    %153 = arith.mulf %144, %130 : vector<1x128xf32>
    %154 = arith.mulf %143, %146 : vector<1x128xf32>
    %155 = arith.addf %153, %154 : vector<1x128xf32>
    %156 = math.tanh %155 : vector<1x128xf32>
    %157 = arith.mulf %152, %156 : vector<1x128xf32>
    %c5 = arith.constant 5 : index
    %c0_33 = arith.constant 0 : index
    %158 = vector.load %arg7[%c5, %c0_33] : memref<8x128xf32, #tpu.memory_space<vmem>>, vector<1x128xf32>
    tpu.vector_store %arg7[%c5, %c0_33], %157 {strides = array<i32>} : memref<8x128xf32, #tpu.memory_space<vmem>>, vector<1x128xf32>,
    %159 = vector.extract_strided_slice %5 {offsets = [6, 0], sizes = [1, 512], strides = [1, 1]} : vector<8x512xf32> to vector<1x512xf32>
    %cst_34 = arith.constant dense<0.000000e+00> : vector<1x512xf32>
    %160 = tpu.matmul %157, %6, %cst_34 {dimension_numbers = #tpu.dot_dimension_numbers<[1], [0], [0], [1], [0, 0, 1, 1], [], []>} : vector<1x128xf32>, vector<128x512xf32>, vector<1x512xf32> -> vector<1x512xf32>
    %161 = arith.addf %159, %160 : vector<1x512xf32>
    %162 = vector.extract_strided_slice %161 {offsets = [0, 0], sizes = [1, 256], strides = [1, 1]} : vector<1x512xf32> to vector<1x256xf32>
    %163 = arith.negf %162 : vector<1x256xf32>
    %164 = math.exp %163 : vector<1x256xf32>
    %cst_35 = arith.constant 1.000000e+00 : f32
    %165 = vector.broadcast %cst_35 : f32 to vector<1x256xf32>
    %166 = arith.addf %165, %164 : vector<1x256xf32>
    %167 = arith.divf %165, %166 : vector<1x256xf32>
    %168 = vector.extract_strided_slice %167 {offsets = [0, 0], sizes = [1, 128], strides = [1, 1]} : vector<1x256xf32> to vector<1x128xf32>
    %169 = vector.extract_strided_slice %167 {offsets = [0, 128], sizes = [1, 128], strides = [1, 1]} : vector<1x256xf32> to vector<1x128xf32>
    %170 = vector.extract_strided_slice %161 {offsets = [0, 256], sizes = [1, 128], strides = [1, 1]} : vector<1x512xf32> to vector<1x128xf32>
    %171 = math.tanh %170 : vector<1x128xf32>
    %172 = vector.extract_strided_slice %161 {offsets = [0, 384], sizes = [1, 128], strides = [1, 1]} : vector<1x512xf32> to vector<1x128xf32>
    %173 = arith.negf %172 : vector<1x128xf32>
    %174 = math.exp %173 : vector<1x128xf32>
    %cst_36 = arith.constant 1.000000e+00 : f32
    %175 = vector.broadcast %cst_36 : f32 to vector<1x128xf32>
    %176 = arith.addf %175, %174 : vector<1x128xf32>
    %177 = arith.divf %175, %176 : vector<1x128xf32>
    %178 = arith.mulf %169, %155 : vector<1x128xf32>
    %179 = arith.mulf %168, %171 : vector<1x128xf32>
    %180 = arith.addf %178, %179 : vector<1x128xf32>
    %181 = math.tanh %180 : vector<1x128xf32>
    %182 = arith.mulf %177, %181 : vector<1x128xf32>
    %c6 = arith.constant 6 : index
    %c0_37 = arith.constant 0 : index
    %183 = vector.load %arg7[%c6, %c0_37] : memref<8x128xf32, #tpu.memory_space<vmem>>, vector<1x128xf32>
    tpu.vector_store %arg7[%c6, %c0_37], %182 {strides = array<i32>} : memref<8x128xf32, #tpu.memory_space<vmem>>, vector<1x128xf32>,
    %184 = vector.extract_strided_slice %5 {offsets = [7, 0], sizes = [1, 512], strides = [1, 1]} : vector<8x512xf32> to vector<1x512xf32>
    %cst_38 = arith.constant dense<0.000000e+00> : vector<1x512xf32>
    %185 = tpu.matmul %182, %6, %cst_38 {dimension_numbers = #tpu.dot_dimension_numbers<[1], [0], [0], [1], [0, 0, 1, 1], [], []>} : vector<1x128xf32>, vector<128x512xf32>, vector<1x512xf32> -> vector<1x512xf32>
    %186 = arith.addf %184, %185 : vector<1x512xf32>
    %187 = vector.extract_strided_slice %186 {offsets = [0, 0], sizes = [1, 256], strides = [1, 1]} : vector<1x512xf32> to vector<1x256xf32>
    %188 = arith.negf %187 : vector<1x256xf32>
    %189 = math.exp %188 : vector<1x256xf32>
    %cst_39 = arith.constant 1.000000e+00 : f32
    %190 = vector.broadcast %cst_39 : f32 to vector<1x256xf32>
    %191 = arith.addf %190, %189 : vector<1x256xf32>
    %192 = arith.divf %190, %191 : vector<1x256xf32>
    %193 = vector.extract_strided_slice %192 {offsets = [0, 0], sizes = [1, 128], strides = [1, 1]} : vector<1x256xf32> to vector<1x128xf32>
    %194 = vector.extract_strided_slice %192 {offsets = [0, 128], sizes = [1, 128], strides = [1, 1]} : vector<1x256xf32> to vector<1x128xf32>
    %195 = vector.extract_strided_slice %186 {offsets = [0, 256], sizes = [1, 128], strides = [1, 1]} : vector<1x512xf32> to vector<1x128xf32>
    %196 = math.tanh %195 : vector<1x128xf32>
    %197 = vector.extract_strided_slice %186 {offsets = [0, 384], sizes = [1, 128], strides = [1, 1]} : vector<1x512xf32> to vector<1x128xf32>
    %198 = arith.negf %197 : vector<1x128xf32>
    %199 = math.exp %198 : vector<1x128xf32>
    %cst_40 = arith.constant 1.000000e+00 : f32
    %200 = vector.broadcast %cst_40 : f32 to vector<1x128xf32>
    %201 = arith.addf %200, %199 : vector<1x128xf32>
    %202 = arith.divf %200, %201 : vector<1x128xf32>
    %203 = arith.mulf %194, %180 : vector<1x128xf32>
    %204 = arith.mulf %193, %196 : vector<1x128xf32>
    %205 = arith.addf %203, %204 : vector<1x128xf32>
    %206 = math.tanh %205 : vector<1x128xf32>
    %207 = arith.mulf %202, %206 : vector<1x128xf32>
    %c7 = arith.constant 7 : index
    %c0_41 = arith.constant 0 : index
    %208 = vector.load %arg7[%c7, %c0_41] : memref<8x128xf32, #tpu.memory_space<vmem>>, vector<1x128xf32>
    tpu.vector_store %arg7[%c7, %c0_41], %207 {strides = array<i32>} : memref<8x128xf32, #tpu.memory_space<vmem>>, vector<1x128xf32>,
    %c0_42 = arith.constant 0 : index
    %c0_43 = arith.constant 0 : index
    %209 = vector.load %arg7[%c0_42, %c0_43] : memref<8x128xf32, #tpu.memory_space<vmem>>, vector<8x128xf32>
    %c0_44 = arith.constant 0 : index
    %c0_45 = arith.constant 0 : index
    %210 = vector.load %arg4[%c0_44, %c0_45] : memref<128x128xf32, #tpu.memory_space<vmem>>, vector<128x128xf32>
    %cst_46 = arith.constant dense<0.000000e+00> : vector<8x128xf32>
    %211 = tpu.matmul %209, %210, %cst_46 {dimension_numbers = #tpu.dot_dimension_numbers<[1], [0], [0], [1], [0, 0, 1, 1], [], []>} : vector<8x128xf32>, vector<128x128xf32>, vector<8x128xf32> -> vector<8x128xf32>
    %c0_47 = arith.constant 0 : index
    %c0_48 = arith.constant 0 : index
    %212 = vector.load %arg5[%c0_47, %c0_48] : memref<1x128xf32, #tpu.memory_space<vmem>>, vector<1x128xf32>
    %213 = vector.broadcast %212 : vector<1x128xf32> to vector<8x128xf32>
    %214 = arith.addf %211, %213 : vector<8x128xf32>
    %c0_49 = arith.constant 0 : index
    %c0_50 = arith.constant 0 : index
    %215 = vector.load %arg6[%c0_49, %c0_50] : memref<8x128xf32, #tpu.memory_space<vmem>>, vector<8x128xf32>
    tpu.vector_store %arg6[%c0_49, %c0_50], %214 {strides = array<i32>} : memref<8x128xf32, #tpu.memory_space<vmem>>, vector<8x128xf32>,
    return
  }
}

</mosaic_0001>

<llo_original>
// kernel: simple_lstm_forward.1
$region0: #{simple_lstm_forward.1}
  #allocation0 [shape = 'u32[]', space=smem, size = 0x4, offset = 0x4, fixed_abs, tag = 'smem constant byte address 0x4 - core index']
  #allocation1 [shape = 'u32[144,128]{1,0:T(1,128)}', space=vmem, size = 0x12000, scoped, tag = 'internal scratch']
  #allocation2 [shape = 'f32[8,128]{1,0:T(8,128)}', space=vmem, size = 0x1000, scoped, tag = 'scratch operand']
  %s0 = inlined_call_operand.vmem [shape: f32[8,16], index: 0, kind: input, shape index: {}]
  %s1 = inlined_call_operand.hbm [shape: f32[16,512], index: 1, kind: input, shape index: {}]
  %s2 = inlined_call_operand.vmem [shape: f32[1,512], index: 2, kind: input, shape index: {}]
  %s3 = inlined_call_operand.hbm [shape: f32[128,512], index: 3, kind: input, shape index: {}]
  %s4 = inlined_call_operand.hbm [shape: f32[128,128], index: 4, kind: input, shape index: {}]
  %s5 = inlined_call_operand.vmem [shape: f32[1,128], index: 5, kind: input, shape index: {}]
  %s6 = inlined_call_operand.vmem [shape: f32[8,128], index: 6, kind: output, shape index: {}]
  %s7 = sld [smem:[#allocation0]]
  $region46: #{simple_lstm_forward.1} parent=0
    _
  %s9 = ssub.s32 1, %s7
  %s10 = scalar_select 0, %s9, %s7
  $region1: #{simple_lstm_forward.1} parent=0
    #allocation3 [shape = 'u8[32768]{0}', space=vmem, size = 0x8000, scoped, tag = 'input window, operand 1, single buffered']
    #allocation4 [shape = 's32[1]{0}', space=sflag, size = 0x4, scoped, tag = 'scoped memory for simple_lstm_forward.1']
    #allocation5 [shape = 'u8[262144]{0}', space=vmem, size = 0x40000, scoped, tag = 'input window, operand 3, single buffered']
    #allocation6 [shape = 's32[1]{0}', space=sflag, size = 0x4, scoped, tag = 'scoped memory for simple_lstm_forward.1']
    #allocation7 [shape = 'u8[65536]{0}', space=vmem, size = 0x10000, scoped, tag = 'input window, operand 4, single buffered']
    %11 = vsyncpa [#allocation4], 0
    %12 = vsyncpa [#allocation6], 0
    // Predicated region
    $region2: #{simple_lstm_forward.1} parent=1 // pred_check
      _
    $region3: #{simple_lstm_forward.1} parent=1 // pred_check_branch
      %14 = sbr.rel (0) target = $region5
    $region4: #{simple_lstm_forward.1} parent=1 // pred_region
      _
    $region5: #{simple_lstm_forward.1} parent=1 // pred_fallthru
      _
    // Predicated region
    $region6: #{simple_lstm_forward.1} parent=1 // pred_check
      _
    $region7: #{simple_lstm_forward.1} parent=1 // pred_check_branch
      %16 = sbr.rel (0) target = $region9
    $region8: #{simple_lstm_forward.1} parent=1 // pred_region
      %s18 = ssub.s32 1024, 1024
      %19 = vsyncadd [#allocation4], %s18
      %s20 = sshll.u32 [#allocation3], 4
      %s21 = int_to_ptr.vmem [resolvable:$true] %s20
      %26 = dma.hbm_to_vmem [thread:$0]  %s1, 1024, %s21, [#allocation4], 512, 512, 32
    $region9: #{simple_lstm_forward.1} parent=1 // pred_fallthru
      _
    // Predicated region
    $region10: #{simple_lstm_forward.1} parent=1 // pred_check
      _
    $region11: #{simple_lstm_forward.1} parent=1 // pred_check_branch
      %28 = sbr.rel (0) target = $region13
    $region12: #{simple_lstm_forward.1} parent=1 // pred_region
      _
    $region13: #{simple_lstm_forward.1} parent=1 // pred_fallthru
      _
    // Predicated region
    $region14: #{simple_lstm_forward.1} parent=1 // pred_check
      _
    $region15: #{simple_lstm_forward.1} parent=1 // pred_check_branch
      %30 = sbr.rel (0) target = $region17
    $region16: #{simple_lstm_forward.1} parent=1 // pred_region
      %s32 = ssub.s32 8192, 8192
      %33 = vsyncadd [#allocation6], %s32
      %s34 = sshll.u32 [#allocation5], 4
      %s35 = int_to_ptr.vmem [resolvable:$true] %s34
      %40 = dma.hbm_to_vmem [thread:$0]  %s3, 8192, %s35, [#allocation6], 512, 512, 32
    $region17: #{simple_lstm_forward.1} parent=1 // pred_fallthru
      _
    // Predicated region
    $region18: #{simple_lstm_forward.1} parent=1 // pred_check
      _
    $region19: #{simple_lstm_forward.1} parent=1 // pred_check_branch
      %42 = sbr.rel (0) target = $region21
    $region20: #{simple_lstm_forward.1} parent=1 // pred_region
      %s44 = ssub.s32 2048, 2048
      %45 = vsyncadd [#allocation6], %s44
      %s46 = sshll.u32 [#allocation7], 4
      %s47 = int_to_ptr.vmem [resolvable:$true] %s46
      %52 = dma.hbm_to_vmem [thread:$0]  %s4, 2048, %s47, [#allocation6], 128, 128, 8
    $region21: #{simple_lstm_forward.1} parent=1 // pred_fallthru
      _
    // Predicated region
    $region22: #{simple_lstm_forward.1} parent=1 // pred_check
      _
    $region23: #{simple_lstm_forward.1} parent=1 // pred_check_branch
      %54 = sbr.rel (0) target = $region25
    $region24: #{simple_lstm_forward.1} parent=1 // pred_region
      _
    $region25: #{simple_lstm_forward.1} parent=1 // pred_fallthru
      _
    // Predicated region
    $region26: #{simple_lstm_forward.1} parent=1 // pred_check
      _
    $region27: #{simple_lstm_forward.1} parent=1 // pred_check_branch
      %56 = sbr.rel (0) target = $region29
    $region28: #{simple_lstm_forward.1} parent=1 // pred_region
      %57 = dma.done [#allocation4], 1024
    $region29: #{simple_lstm_forward.1} parent=1 // pred_fallthru
      _
    // Predicated region
    $region30: #{simple_lstm_forward.1} parent=1 // pred_check
      _
    $region31: #{simple_lstm_forward.1} parent=1 // pred_check_branch
      %59 = sbr.rel (0) target = $region33
    $region32: #{simple_lstm_forward.1} parent=1 // pred_region
      %60 = dma.done [#allocation6], 8192
    $region33: #{simple_lstm_forward.1} parent=1 // pred_fallthru
      _
    // Predicated region
    $region34: #{simple_lstm_forward.1} parent=1 // pred_check
      _
    $region35: #{simple_lstm_forward.1} parent=1 // pred_check_branch
      %62 = sbr.rel (0) target = $region37
    $region36: #{simple_lstm_forward.1} parent=1 // pred_region
      %63 = dma.done [#allocation6], 2048
    $region37: #{simple_lstm_forward.1} parent=1 // pred_fallthru
      _
    %v64 = vld [vmem:[%s0] sm:$0xff]
    %v65 = vld [vmem:[#allocation3] sm:$0xff]
    %v66 = vld [vmem:[#allocation3 + $0x8] sm:$0xff]
    %v67 = vld [vmem:[#allocation3 + $0x10] sm:$0xff]
    %v68 = vld [vmem:[#allocation3 + $0x18] sm:$0xff]
    %v69 = vld [vmem:[#allocation3 + $0x20] sm:$0xff]
    %v70 = vld [vmem:[#allocation3 + $0x28] sm:$0xff]
    %v71 = vld [vmem:[#allocation3 + $0x30] sm:$0xff]
    %v72 = vld [vmem:[#allocation3 + $0x38] sm:$0xff]
    %v73 = vld [vmem:[%s2] sm:$0xf]
    %v75 = vlaneseq
    %v76 = vshrl.u32 %v75, 7
    %v77 = vsub.s32 0, %v76
    %v78 = vrot.slane %v73, %v77
    %v79 = vlaneseq
    %v80 = vshrl.u32 %v79, 7
    %v81 = vsub.s32 1, %v80
    %v82 = vrot.slane %v73, %v81
    %v83 = vlaneseq
    %v84 = vshrl.u32 %v83, 7
    %v85 = vsub.s32 2, %v84
    %v86 = vrot.slane %v73, %v85
    %v87 = vlaneseq
    %v88 = vshrl.u32 %v87, 7
    %v89 = vsub.s32 3, %v88
    %v90 = vrot.slane %v73, %v89
    %vm95 = vcmask 130048
    %v97 = vsel %vm95, %v64, 0
    %99 = vmatprep.subr.mxu0 0.0
    %100 = vmatpush1.msra.mxu0 0.0
    %101 = vmatprep.subr.mxu0 0.0
    %102 = vmatpush1.msra.mxu0 0.0
    %103 = vmatprep.subr.mxu0 0.0
    %104 = vmatpush1.msra.mxu0 0.0
    %105 = vmatprep.subr.mxu0 0.0
    %106 = vmatpush1.msra.mxu0 0.0
    %107 = vmatprep.subr.mxu0 0.0
    %108 = vmatpush1.msra.mxu0 0.0
    %109 = vmatprep.subr.mxu0 0.0
    %110 = vmatpush1.msra.mxu0 0.0
    %111 = vmatprep.subr.mxu0 0.0
    %112 = vmatpush1.msra.mxu0 0.0
    %113 = vmatprep.subr.mxu0 0.0
    %114 = vmatpush1.msra.mxu0 0.0
    %115 = vmatprep.subr.mxu0 0.0
    %116 = vmatpush1.msra.mxu0 0.0
    %117 = vmatprep.subr.mxu0 0.0
    %118 = vmatpush1.msra.mxu0 0.0
    %119 = vmatprep.subr.mxu0 0.0
    %120 = vmatpush1.msra.mxu0 0.0
    %121 = vmatprep.subr.mxu0 0.0
    %122 = vmatpush1.msra.mxu0 0.0
    %123 = vmatprep.subr.mxu0 0.0
    %124 = vmatpush1.msra.mxu0 0.0
    %125 = vmatprep.subr.mxu0 0.0
    %126 = vmatpush1.msra.mxu0 0.0
    %127 = vmatprep.subr.mxu0 %v70
    %128 = vmatpush1.msra.mxu0 %v69
    %129 = vmatprep.subr.mxu0 %v66
    %130 = vmatpush1.msra.mxu0 %v65
    %131 = vmatprep.subr.mxu0 0.0
    %132 = vmatpush2.msra.mxu0 0.0
    %133 = vmatprep.subr.mxu0 0.0
    %134 = vmatpush2.msra.mxu0 0.0
    %135 = vmatprep.subr.mxu0 0.0
    %136 = vmatpush2.msra.mxu0 0.0
    %137 = vmatprep.subr.mxu0 0.0
    %138 = vmatpush2.msra.mxu0 0.0
    %139 = vmatprep.subr.mxu0 0.0
    %140 = vmatpush2.msra.mxu0 0.0
    %141 = vmatprep.subr.mxu0 0.0
    %142 = vmatpush2.msra.mxu0 0.0
    %143 = vmatprep.subr.mxu0 0.0
    %144 = vmatpush2.msra.mxu0 0.0
    %145 = vmatprep.subr.mxu0 0.0
    %146 = vmatpush2.msra.mxu0 0.0
    %147 = vmatprep.subr.mxu0 0.0
    %148 = vmatpush2.msra.mxu0 0.0
    %149 = vmatprep.subr.mxu0 0.0
    %150 = vmatpush2.msra.mxu0 0.0
    %151 = vmatprep.subr.mxu0 0.0
    %152 = vmatpush2.msra.mxu0 0.0
    %153 = vmatprep.subr.mxu0 0.0
    %154 = vmatpush2.msra.mxu0 0.0
    %155 = vmatprep.subr.mxu0 0.0
    %156 = vmatpush2.msra.mxu0 0.0
    %157 = vmatprep.subr.mxu0 0.0
    %158 = vmatpush2.msra.mxu0 0.0
    %159 = vmatprep.subr.mxu0 0.0
    %160 = vmatpush2.msra.mxu0 0.0
    %161 = vmatprep.subr.mxu0 0.0
    %162 = vmatpush2.msra.mxu0 0.0
    %163 = vmatprep.mubr.f32.mxu0 0.0
    %164 = vmatmul.mubr.f32.gmra.mxu0 %v97
    %v165 = vpop.f32.mrf.mxu0
    %v166 = vadd.f32 %v78, %v165
    %v167 = vpop.f32.mrf.mxu0
    %v168 = vadd.f32 %v82, %v167
    %169 = vdwg.mxu0
    %170 = vmatprep.subr.mxu0 0.0
    %171 = vmatpush1.msra.mxu0 0.0
    %172 = vmatprep.subr.mxu0 0.0
    %173 = vmatpush1.msra.mxu0 0.0
    %174 = vmatprep.subr.mxu0 0.0
    %175 = vmatpush1.msra.mxu0 0.0
    %176 = vmatprep.subr.mxu0 0.0
    %177 = vmatpush1.msra.mxu0 0.0
    %178 = vmatprep.subr.mxu0 0.0
    %179 = vmatpush1.msra.mxu0 0.0
    %180 = vmatprep.subr.mxu0 0.0
    %181 = vmatpush1.msra.mxu0 0.0
    %182 = vmatprep.subr.mxu0 0.0
    %183 = vmatpush1.msra.mxu0 0.0
    %184 = vmatprep.subr.mxu0 0.0
    %185 = vmatpush1.msra.mxu0 0.0
    %186 = vmatprep.subr.mxu0 0.0
    %187 = vmatpush1.msra.mxu0 0.0
    %188 = vmatprep.subr.mxu0 0.0
    %189 = vmatpush1.msra.mxu0 0.0
    %190 = vmatprep.subr.mxu0 0.0
    %191 = vmatpush1.msra.mxu0 0.0
    %192 = vmatprep.subr.mxu0 0.0
    %193 = vmatpush1.msra.mxu0 0.0
    %194 = vmatprep.subr.mxu0 0.0
    %195 = vmatpush1.msra.mxu0 0.0
    %196 = vmatprep.subr.mxu0 0.0
    %197 = vmatpush1.msra.mxu0 0.0
    %198 = vmatprep.subr.mxu0 %v72
    %199 = vmatpush1.msra.mxu0 %v71
    %200 = vmatprep.subr.mxu0 %v68
    %201 = vmatpush1.msra.mxu0 %v67
    %202 = vmatprep.subr.mxu0 0.0
    %203 = vmatpush2.msra.mxu0 0.0
    %204 = vmatprep.subr.mxu0 0.0
    %205 = vmatpush2.msra.mxu0 0.0
    %206 = vmatprep.subr.mxu0 0.0
    %207 = vmatpush2.msra.mxu0 0.0
    %208 = vmatprep.subr.mxu0 0.0
    %209 = vmatpush2.msra.mxu0 0.0
    %210 = vmatprep.subr.mxu0 0.0
    %211 = vmatpush2.msra.mxu0 0.0
    %212 = vmatprep.subr.mxu0 0.0
    %213 = vmatpush2.msra.mxu0 0.0
    %214 = vmatprep.subr.mxu0 0.0
    %215 = vmatpush2.msra.mxu0 0.0
    %216 = vmatprep.subr.mxu0 0.0
    %217 = vmatpush2.msra.mxu0 0.0
    %218 = vmatprep.subr.mxu0 0.0
    %219 = vmatpush2.msra.mxu0 0.0
    %220 = vmatprep.subr.mxu0 0.0
    %221 = vmatpush2.msra.mxu0 0.0
    %222 = vmatprep.subr.mxu0 0.0
    %223 = vmatpush2.msra.mxu0 0.0
    %224 = vmatprep.subr.mxu0 0.0
    %225 = vmatpush2.msra.mxu0 0.0
    %226 = vmatprep.subr.mxu0 0.0
    %227 = vmatpush2.msra.mxu0 0.0
    %228 = vmatprep.subr.mxu0 0.0
    %229 = vmatpush2.msra.mxu0 0.0
    %230 = vmatprep.subr.mxu0 0.0
    %231 = vmatpush2.msra.mxu0 0.0
    %232 = vmatprep.subr.mxu0 0.0
    %233 = vmatpush2.msra.mxu0 0.0
    %234 = vmatprep.mubr.f32.mxu0 0.0
    %235 = vmatmul.mubr.f32.gmra.mxu0 %v97
    %v236 = vpop.f32.mrf.mxu0
    %v237 = vadd.f32 %v86, %v236
    %v238 = vpop.f32.mrf.mxu0
    %v239 = vadd.f32 %v90, %v238
    %240 = vdwg.mxu0
    %v241 = vld [vmem:[#allocation5] sm:$0xff]
    %v242 = vld [vmem:[#allocation5 + $0x8] sm:$0xff]
    %v243 = vld [vmem:[#allocation5 + $0x10] sm:$0xff]
    %v244 = vld [vmem:[#allocation5 + $0x18] sm:$0xff]
    %v245 = vld [vmem:[#allocation5 + $0x20] sm:$0xff]
    %v246 = vld [vmem:[#allocation5 + $0x28] sm:$0xff]
    %v247 = vld [vmem:[#allocation5 + $0x30] sm:$0xff]
    %v248 = vld [vmem:[#allocation5 + $0x38] sm:$0xff]
    %v249 = vld [vmem:[#allocation5 + $0x40] sm:$0xff]
    %v250 = vld [vmem:[#allocation5 + $0x48] sm:$0xff]
    %v251 = vld [vmem:[#allocation5 + $0x50] sm:$0xff]
    %v252 = vld [vmem:[#allocation5 + $0x58] sm:$0xff]
    %v253 = vld [vmem:[#allocation5 + $0x60] sm:$0xff]
    %v254 = vld [vmem:[#allocation5 + $0x68] sm:$0xff]
    %v255 = vld [vmem:[#allocation5 + $0x70] sm:$0xff]
    %v256 = vld [vmem:[#allocation5 + $0x78] sm:$0xff]
    %v257 = vld [vmem:[#allocation5 + $0x80] sm:$0xff]
    %v258 = vld [vmem:[#allocation5 + $0x88] sm:$0xff]
    %v259 = vld [vmem:[#allocation5 + $0x90] sm:$0xff]
    %v260 = vld [vmem:[#allocation5 + $0x98] sm:$0xff]
    %v261 = vld [vmem:[#allocation5 + $0xa0] sm:$0xff]
    %v262 = vld [vmem:[#allocation5 + $0xa8] sm:$0xff]
    %v263 = vld [vmem:[#allocation5 + $0xb0] sm:$0xff]
    %v264 = vld [vmem:[#allocation5 + $0xb8] sm:$0xff]
    %v265 = vld [vmem:[#allocation5 + $0xc0] sm:$0xff]
    %v266 = vld [vmem:[#allocation5 + $0xc8] sm:$0xff]
    %v267 = vld [vmem:[#allocation5 + $0xd0] sm:$0xff]
    %v268 = vld [vmem:[#allocation5 + $0xd8] sm:$0xff]
    %v269 = vld [vmem:[#allocation5 + $0xe0] sm:$0xff]
    %v270 = vld [vmem:[#allocation5 + $0xe8] sm:$0xff]
    %v271 = vld [vmem:[#allocation5 + $0xf0] sm:$0xff]
    %v272 = vld [vmem:[#allocation5 + $0xf8] sm:$0xff]
    %v273 = vld [vmem:[#allocation5 + $0x100] sm:$0xff]
    %v274 = vld [vmem:[#allocation5 + $0x108] sm:$0xff]
    %v275 = vld [vmem:[#allocation5 + $0x110] sm:$0xff]
    %v276 = vld [vmem:[#allocation5 + $0x118] sm:$0xff]
    %v277 = vld [vmem:[#allocation5 + $0x120] sm:$0xff]
    %v278 = vld [vmem:[#allocation5 + $0x128] sm:$0xff]
    %v279 = vld [vmem:[#allocation5 + $0x130] sm:$0xff]
    %v280 = vld [vmem:[#allocation5 + $0x138] sm:$0xff]
    %v281 = vld [vmem:[#allocation5 + $0x140] sm:$0xff]
    %v282 = vld [vmem:[#allocation5 + $0x148] sm:$0xff]
    %v283 = vld [vmem:[#allocation5 + $0x150] sm:$0xff]
    %v284 = vld [vmem:[#allocation5 + $0x158] sm:$0xff]
    %v285 = vld [vmem:[#allocation5 + $0x160] sm:$0xff]
    %v286 = vld [vmem:[#allocation5 + $0x168] sm:$0xff]
    %v287 = vld [vmem:[#allocation5 + $0x170] sm:$0xff]
    %v288 = vld [vmem:[#allocation5 + $0x178] sm:$0xff]
    %v289 = vld [vmem:[#allocation5 + $0x180] sm:$0xff]
    %v290 = vld [vmem:[#allocation5 + $0x188] sm:$0xff]
    %v291 = vld [vmem:[#allocation5 + $0x190] sm:$0xff]
    %v292 = vld [vmem:[#allocation5 + $0x198] sm:$0xff]
    %v293 = vld [vmem:[#allocation5 + $0x1a0] sm:$0xff]
    %v294 = vld [vmem:[#allocation5 + $0x1a8] sm:$0xff]
    %v295 = vld [vmem:[#allocation5 + $0x1b0] sm:$0xff]
    %v296 = vld [vmem:[#allocation5 + $0x1b8] sm:$0xff]
    %v297 = vld [vmem:[#allocation5 + $0x1c0] sm:$0xff]
    %v298 = vld [vmem:[#allocation5 + $0x1c8] sm:$0xff]
    %v299 = vld [vmem:[#allocation5 + $0x1d0] sm:$0xff]
    %v300 = vld [vmem:[#allocation5 + $0x1d8] sm:$0xff]
    %v301 = vld [vmem:[#allocation5 + $0x1e0] sm:$0xff]
    %v302 = vld [vmem:[#allocation5 + $0x1e8] sm:$0xff]
    %v303 = vld [vmem:[#allocation5 + $0x1f0] sm:$0xff]
    %v304 = vld [vmem:[#allocation5 + $0x1f8] sm:$0xff]
    %305 = vmatprep.subr.mxu0 %v302
    %306 = vmatpush1.msra.mxu0 %v301
    %307 = vmatprep.subr.mxu0 %v298
    %308 = vmatpush1.msra.mxu0 %v297
    %309 = vmatprep.subr.mxu0 %v294
    %310 = vmatpush1.msra.mxu0 %v293
    %311 = vmatprep.subr.mxu0 %v290
    %312 = vmatpush1.msra.mxu0 %v289
    %313 = vmatprep.subr.mxu0 %v286
    %314 = vmatpush1.msra.mxu0 %v285
    %315 = vmatprep.subr.mxu0 %v282
    %316 = vmatpush1.msra.mxu0 %v281
    %317 = vmatprep.subr.mxu0 %v278
    %318 = vmatpush1.msra.mxu0 %v277
    %319 = vmatprep.subr.mxu0 %v274
    %320 = vmatpush1.msra.mxu0 %v273
    %321 = vmatprep.subr.mxu0 %v270
    %322 = vmatpush1.msra.mxu0 %v269
    %323 = vmatprep.subr.mxu0 %v266
    %324 = vmatpush1.msra.mxu0 %v265
    %325 = vmatprep.subr.mxu0 %v262
    %326 = vmatpush1.msra.mxu0 %v261
    %327 = vmatprep.subr.mxu0 %v258
    %328 = vmatpush1.msra.mxu0 %v257
    %329 = vmatprep.subr.mxu0 %v254
    %330 = vmatpush1.msra.mxu0 %v253
    %331 = vmatprep.subr.mxu0 %v250
    %332 = vmatpush1.msra.mxu0 %v249
    %333 = vmatprep.subr.mxu0 %v246
    %334 = vmatpush1.msra.mxu0 %v245
    %335 = vmatprep.subr.mxu0 %v242
    %336 = vmatpush1.msra.mxu0 %v241
    %337 = vmatprep.subr.mxu0 0.0
    %338 = vmatpush2.msra.mxu0 0.0
    %339 = vmatprep.subr.mxu0 0.0
    %340 = vmatpush2.msra.mxu0 0.0
    %341 = vmatprep.subr.mxu0 0.0
    %342 = vmatpush2.msra.mxu0 0.0
    %343 = vmatprep.subr.mxu0 0.0
    %344 = vmatpush2.msra.mxu0 0.0
    %345 = vmatprep.subr.mxu0 0.0
    %346 = vmatpush2.msra.mxu0 0.0
    %347 = vmatprep.subr.mxu0 0.0
    %348 = vmatpush2.msra.mxu0 0.0
    %349 = vmatprep.subr.mxu0 0.0
    %350 = vmatpush2.msra.mxu0 0.0
    %351 = vmatprep.subr.mxu0 0.0
    %352 = vmatpush2.msra.mxu0 0.0
    %353 = vmatprep.subr.mxu0 0.0
    %354 = vmatpush2.msra.mxu0 0.0
    %355 = vmatprep.subr.mxu0 0.0
    %356 = vmatpush2.msra.mxu0 0.0
    %357 = vmatprep.subr.mxu0 0.0
    %358 = vmatpush2.msra.mxu0 0.0
    %359 = vmatprep.subr.mxu0 0.0
    %360 = vmatpush2.msra.mxu0 0.0
    %361 = vmatprep.subr.mxu0 0.0
    %362 = vmatpush2.msra.mxu0 0.0
    %363 = vmatprep.subr.mxu0 0.0
    %364 = vmatpush2.msra.mxu0 0.0
    %365 = vmatprep.subr.mxu0 0.0
    %366 = vmatpush2.msra.mxu0 0.0
    %367 = vmatprep.subr.mxu0 0.0
    %368 = vmatpush2.msra.mxu0 0.0
    %369 = vmatprep.mubr.f32.mxu0 0.0
    %370 = vmatmul.mubr.f32.gmra.mxu0 0.0
    %v371 = vpop.f32.mrf.mxu0
    %v372 = vadd.f32 0.0, %v371
    %v373 = vpop.f32.mrf.mxu0
    %v374 = vadd.f32 0.0, %v373
    %375 = vdwg.mxu0
    %376 = vmatprep.subr.mxu0 %v304
    %377 = vmatpush1.msra.mxu0 %v303
    %378 = vmatprep.subr.mxu0 %v300
    %379 = vmatpush1.msra.mxu0 %v299
    %380 = vmatprep.subr.mxu0 %v296
    %381 = vmatpush1.msra.mxu0 %v295
    %382 = vmatprep.subr.mxu0 %v292
    %383 = vmatpush1.msra.mxu0 %v291
    %384 = vmatprep.subr.mxu0 %v288
    %385 = vmatpush1.msra.mxu0 %v287
    %386 = vmatprep.subr.mxu0 %v284
    %387 = vmatpush1.msra.mxu0 %v283
    %388 = vmatprep.subr.mxu0 %v280
    %389 = vmatpush1.msra.mxu0 %v279
    %390 = vmatprep.subr.mxu0 %v276
    %391 = vmatpush1.msra.mxu0 %v275
    %392 = vmatprep.subr.mxu0 %v272
    %393 = vmatpush1.msra.mxu0 %v271
    %394 = vmatprep.subr.mxu0 %v268
    %395 = vmatpush1.msra.mxu0 %v267
    %396 = vmatprep.subr.mxu0 %v264
    %397 = vmatpush1.msra.mxu0 %v263
    %398 = vmatprep.subr.mxu0 %v260
    %399 = vmatpush1.msra.mxu0 %v259
    %400 = vmatprep.subr.mxu0 %v256
    %401 = vmatpush1.msra.mxu0 %v255
    %402 = vmatprep.subr.mxu0 %v252
    %403 = vmatpush1.msra.mxu0 %v251
    %404 = vmatprep.subr.mxu0 %v248
    %405 = vmatpush1.msra.mxu0 %v247
    %406 = vmatprep.subr.mxu0 %v244
    %407 = vmatpush1.msra.mxu0 %v243
    %408 = vmatprep.subr.mxu0 0.0
    %409 = vmatpush2.msra.mxu0 0.0
    %410 = vmatprep.subr.mxu0 0.0
    %411 = vmatpush2.msra.mxu0 0.0
    %412 = vmatprep.subr.mxu0 0.0
    %413 = vmatpush2.msra.mxu0 0.0
    %414 = vmatprep.subr.mxu0 0.0
    %415 = vmatpush2.msra.mxu0 0.0
    %416 = vmatprep.subr.mxu0 0.0
    %417 = vmatpush2.msra.mxu0 0.0
    %418 = vmatprep.subr.mxu0 0.0
    %419 = vmatpush2.msra.mxu0 0.0
    %420 = vmatprep.subr.mxu0 0.0
    %421 = vmatpush2.msra.mxu0 0.0
    %422 = vmatprep.subr.mxu0 0.0
    %423 = vmatpush2.msra.mxu0 0.0
    %424 = vmatprep.subr.mxu0 0.0
    %425 = vmatpush2.msra.mxu0 0.0
    %426 = vmatprep.subr.mxu0 0.0
    %427 = vmatpush2.msra.mxu0 0.0
    %428 = vmatprep.subr.mxu0 0.0
    %429 = vmatpush2.msra.mxu0 0.0
    %430 = vmatprep.subr.mxu0 0.0
    %431 = vmatpush2.msra.mxu0 0.0
    %432 = vmatprep.subr.mxu0 0.0
    %433 = vmatpush2.msra.mxu0 0.0
    %434 = vmatprep.subr.mxu0 0.0
    %435 = vmatpush2.msra.mxu0 0.0
    %436 = vmatprep.subr.mxu0 0.0
    %437 = vmatpush2.msra.mxu0 0.0
    %438 = vmatprep.subr.mxu0 0.0
    %439 = vmatpush2.msra.mxu0 0.0
    %440 = vmatprep.mubr.f32.mxu0 0.0
    %441 = vmatmul.mubr.f32.gmra.mxu0 0.0
    %v442 = vpop.f32.mrf.mxu0
    %v443 = vadd.f32 0.0, %v442
    %v444 = vpop.f32.mrf.mxu0
    %v445 = vadd.f32 0.0, %v444
    %446 = vdwg.mxu0
    %v447 = vadd.f32 %v166, %v372
    %v448 = vadd.f32 %v168, %v374
    %v449 = vadd.f32 %v237, %v443
    %v450 = vadd.f32 %v239, %v445
    %v451 = vxor.u32 %v447, 2147483648
    %v452 = vxor.u32 %v448, 2147483648
    %v453 = vmul.f32 %v451, 1.442695
    %v454 = vpow.pop %v453
    %v455 = vmul.f32 %v452, 1.442695
    %v456 = vpow.pop %v455
    %v457 = vadd.f32 %v454, 1.0
    %v458 = vadd.f32 %v456, 1.0
    %v459 = vrcp.pop %v457
    %v460 = vmul.f32 1.0, %v459
    %v461 = vrcp.pop %v458
    %v462 = vmul.f32 1.0, %v461
    %v463 = vtanh.pop %v449
    %v464 = vxor.u32 %v450, 2147483648
    %v465 = vmul.f32 %v464, 1.442695
    %v466 = vpow.pop %v465
    %v467 = vadd.f32 %v466, 1.0
    %v468 = vrcp.pop %v467
    %v469 = vmul.f32 1.0, %v468
    %v470 = vmul.f32 %v462, 0.0
    %v471 = vmul.f32 %v460, %v463
    %v472 = vadd.f32 %v470, %v471
    %v473 = vtanh.pop %v472
    %v474 = vmul.f32 %v469, %v473
    %475 = vst [vmem:[#allocation2] sm:$0x1] %v474
    %476 = vmatprep.subr.mxu0 %v302
    %477 = vmatpush1.msra.mxu0 %v301
    %478 = vmatprep.subr.mxu0 %v298
    %479 = vmatpush1.msra.mxu0 %v297
    %480 = vmatprep.subr.mxu0 %v294
    %481 = vmatpush1.msra.mxu0 %v293
    %482 = vmatprep.subr.mxu0 %v290
    %483 = vmatpush1.msra.mxu0 %v289
    %484 = vmatprep.subr.mxu0 %v286
    %485 = vmatpush1.msra.mxu0 %v285
    %486 = vmatprep.subr.mxu0 %v282
    %487 = vmatpush1.msra.mxu0 %v281
    %488 = vmatprep.subr.mxu0 %v278
    %489 = vmatpush1.msra.mxu0 %v277
    %490 = vmatprep.subr.mxu0 %v274
    %491 = vmatpush1.msra.mxu0 %v273
    %492 = vmatprep.subr.mxu0 %v270
    %493 = vmatpush1.msra.mxu0 %v269
    %494 = vmatprep.subr.mxu0 %v266
    %495 = vmatpush1.msra.mxu0 %v265
    %496 = vmatprep.subr.mxu0 %v262
    %497 = vmatpush1.msra.mxu0 %v261
    %498 = vmatprep.subr.mxu0 %v258
    %499 = vmatpush1.msra.mxu0 %v257
    %500 = vmatprep.subr.mxu0 %v254
    %501 = vmatpush1.msra.mxu0 %v253
    %502 = vmatprep.subr.mxu0 %v250
    %503 = vmatpush1.msra.mxu0 %v249
    %504 = vmatprep.subr.mxu0 %v246
    %505 = vmatpush1.msra.mxu0 %v245
    %506 = vmatprep.subr.mxu0 %v242
    %507 = vmatpush1.msra.mxu0 %v241
    %508 = vmatprep.subr.mxu0 0.0
    %509 = vmatpush2.msra.mxu0 0.0
    %510 = vmatprep.subr.mxu0 0.0
    %511 = vmatpush2.msra.mxu0 0.0
    %512 = vmatprep.subr.mxu0 0.0
    %513 = vmatpush2.msra.mxu0 0.0
    %514 = vmatprep.subr.mxu0 0.0
    %515 = vmatpush2.msra.mxu0 0.0
    %516 = vmatprep.subr.mxu0 0.0
    %517 = vmatpush2.msra.mxu0 0.0
    %518 = vmatprep.subr.mxu0 0.0
    %519 = vmatpush2.msra.mxu0 0.0
    %520 = vmatprep.subr.mxu0 0.0
    %521 = vmatpush2.msra.mxu0 0.0
    %522 = vmatprep.subr.mxu0 0.0
    %523 = vmatpush2.msra.mxu0 0.0
    %524 = vmatprep.subr.mxu0 0.0
    %525 = vmatpush2.msra.mxu0 0.0
    %526 = vmatprep.subr.mxu0 0.0
    %527 = vmatpush2.msra.mxu0 0.0
    %528 = vmatprep.subr.mxu0 0.0
    %529 = vmatpush2.msra.mxu0 0.0
    %530 = vmatprep.subr.mxu0 0.0
    %531 = vmatpush2.msra.mxu0 0.0
    %532 = vmatprep.subr.mxu0 0.0
    %533 = vmatpush2.msra.mxu0 0.0
    %534 = vmatprep.subr.mxu0 0.0
    %535 = vmatpush2.msra.mxu0 0.0
    %536 = vmatprep.subr.mxu0 0.0
    %537 = vmatpush2.msra.mxu0 0.0
    %538 = vmatprep.subr.mxu0 0.0
    %539 = vmatpush2.msra.mxu0 0.0
    %540 = vmatprep.mubr.f32.mxu0 0.0
    %541 = vmatmul.mubr.f32.gmra.mxu0 %v474
    %v542 = vpop.f32.mrf.mxu0
    %v543 = vadd.f32 0.0, %v542
    %v544 = vpop.f32.mrf.mxu0
    %v545 = vadd.f32 0.0, %v544
    %546 = vdwg.mxu0
    %547 = vmatprep.subr.mxu0 %v304
    %548 = vmatpush1.msra.mxu0 %v303
    %549 = vmatprep.subr.mxu0 %v300
    %550 = vmatpush1.msra.mxu0 %v299
    %551 = vmatprep.subr.mxu0 %v296
    %552 = vmatpush1.msra.mxu0 %v295
    %553 = vmatprep.subr.mxu0 %v292
    %554 = vmatpush1.msra.mxu0 %v291
    %555 = vmatprep.subr.mxu0 %v288
    %556 = vmatpush1.msra.mxu0 %v287
    %557 = vmatprep.subr.mxu0 %v284
    %558 = vmatpush1.msra.mxu0 %v283
    %559 = vmatprep.subr.mxu0 %v280
    %560 = vmatpush1.msra.mxu0 %v279
    %561 = vmatprep.subr.mxu0 %v276
    %562 = vmatpush1.msra.mxu0 %v275
    %563 = vmatprep.subr.mxu0 %v272
    %564 = vmatpush1.msra.mxu0 %v271
    %565 = vmatprep.subr.mxu0 %v268
    %566 = vmatpush1.msra.mxu0 %v267
    %567 = vmatprep.subr.mxu0 %v264
    %568 = vmatpush1.msra.mxu0 %v263
    %569 = vmatprep.subr.mxu0 %v260
    %570 = vmatpush1.msra.mxu0 %v259
    %571 = vmatprep.subr.mxu0 %v256
    %572 = vmatpush1.msra.mxu0 %v255
    %573 = vmatprep.subr.mxu0 %v252
    %574 = vmatpush1.msra.mxu0 %v251
    %575 = vmatprep.subr.mxu0 %v248
    %576 = vmatpush1.msra.mxu0 %v247
    %577 = vmatprep.subr.mxu0 %v244
    %578 = vmatpush1.msra.mxu0 %v243
    %579 = vmatprep.subr.mxu0 0.0
    %580 = vmatpush2.msra.mxu0 0.0
    %581 = vmatprep.subr.mxu0 0.0
    %582 = vmatpush2.msra.mxu0 0.0
    %583 = vmatprep.subr.mxu0 0.0
    %584 = vmatpush2.msra.mxu0 0.0
    %585 = vmatprep.subr.mxu0 0.0
    %586 = vmatpush2.msra.mxu0 0.0
    %587 = vmatprep.subr.mxu0 0.0
    %588 = vmatpush2.msra.mxu0 0.0
    %589 = vmatprep.subr.mxu0 0.0
    %590 = vmatpush2.msra.mxu0 0.0
    %591 = vmatprep.subr.mxu0 0.0
    %592 = vmatpush2.msra.mxu0 0.0
    %593 = vmatprep.subr.mxu0 0.0
    %594 = vmatpush2.msra.mxu0 0.0
    %595 = vmatprep.subr.mxu0 0.0
    %596 = vmatpush2.msra.mxu0 0.0
    %597 = vmatprep.subr.mxu0 0.0
    %598 = vmatpush2.msra.mxu0 0.0
    %599 = vmatprep.subr.mxu0 0.0
    %600 = vmatpush2.msra.mxu0 0.0
    %601 = vmatprep.subr.mxu0 0.0
    %602 = vmatpush2.msra.mxu0 0.0
    %603 = vmatprep.subr.mxu0 0.0
    %604 = vmatpush2.msra.mxu0 0.0
    %605 = vmatprep.subr.mxu0 0.0
    %606 = vmatpush2.msra.mxu0 0.0
    %607 = vmatprep.subr.mxu0 0.0
    %608 = vmatpush2.msra.mxu0 0.0
    %609 = vmatprep.subr.mxu0 0.0
    %610 = vmatpush2.msra.mxu0 0.0
    %611 = vmatprep.mubr.f32.mxu0 0.0
    %612 = vmatmul.mubr.f32.gmra.mxu0 %v474
    %v613 = vpop.f32.mrf.mxu0
    %v614 = vadd.f32 0.0, %v613
    %v615 = vpop.f32.mrf.mxu0
    %v616 = vadd.f32 0.0, %v615
    %617 = vdwg.mxu0
    %v622 = vrot.slane %v543, 7
    %v623 = vrot.slane %v545, 7
    %v624 = vrot.slane %v614, 7
    %v625 = vrot.slane %v616, 7
    %v630 = vadd.f32 %v166, %v622
    %v631 = vadd.f32 %v168, %v623
    %v632 = vadd.f32 %v237, %v624
    %v633 = vadd.f32 %v239, %v625
    %v634 = vxor.u32 %v630, 2147483648
    %v635 = vxor.u32 %v631, 2147483648
    %v636 = vmul.f32 %v634, 1.442695
    %v637 = vpow.pop %v636
    %v638 = vmul.f32 %v635, 1.442695
    %v639 = vpow.pop %v638
    %v640 = vadd.f32 %v637, 1.0
    %v641 = vadd.f32 %v639, 1.0
    %v642 = vrcp.pop %v640
    %v643 = vmul.f32 1.0, %v642
    %v644 = vrcp.pop %v641
    %v645 = vmul.f32 1.0, %v644
    %v646 = vtanh.pop %v632
    %v647 = vxor.u32 %v633, 2147483648
    %v648 = vmul.f32 %v647, 1.442695
    %v649 = vpow.pop %v648
    %v650 = vadd.f32 %v649, 1.0
    %v651 = vrcp.pop %v650
    %v652 = vmul.f32 1.0, %v651
    %v654 = vrot.slane %v472, 7
    %v656 = vmul.f32 %v645, %v654
    %v657 = vmul.f32 %v643, %v646
    %v658 = vadd.f32 %v656, %v657
    %v659 = vtanh.pop %v658
    %v660 = vmul.f32 %v652, %v659
    %661 = vst [vmem:[#allocation2] sm:$0x2] %v660
    %v663 = vrot.slane %v660, 1
    %665 = vmatprep.subr.mxu0 %v302
    %666 = vmatpush1.msra.mxu0 %v301
    %667 = vmatprep.subr.mxu0 %v298
    %668 = vmatpush1.msra.mxu0 %v297
    %669 = vmatprep.subr.mxu0 %v294
    %670 = vmatpush1.msra.mxu0 %v293
    %671 = vmatprep.subr.mxu0 %v290
    %672 = vmatpush1.msra.mxu0 %v289
    %673 = vmatprep.subr.mxu0 %v286
    %674 = vmatpush1.msra.mxu0 %v285
    %675 = vmatprep.subr.mxu0 %v282
    %676 = vmatpush1.msra.mxu0 %v281
    %677 = vmatprep.subr.mxu0 %v278
    %678 = vmatpush1.msra.mxu0 %v277
    %679 = vmatprep.subr.mxu0 %v274
    %680 = vmatpush1.msra.mxu0 %v273
    %681 = vmatprep.subr.mxu0 %v270
    %682 = vmatpush1.msra.mxu0 %v269
    %683 = vmatprep.subr.mxu0 %v266
    %684 = vmatpush1.msra.mxu0 %v265
    %685 = vmatprep.subr.mxu0 %v262
    %686 = vmatpush1.msra.mxu0 %v261
    %687 = vmatprep.subr.mxu0 %v258
    %688 = vmatpush1.msra.mxu0 %v257
    %689 = vmatprep.subr.mxu0 %v254
    %690 = vmatpush1.msra.mxu0 %v253
    %691 = vmatprep.subr.mxu0 %v250
    %692 = vmatpush1.msra.mxu0 %v249
    %693 = vmatprep.subr.mxu0 %v246
    %694 = vmatpush1.msra.mxu0 %v245
    %695 = vmatprep.subr.mxu0 %v242
    %696 = vmatpush1.msra.mxu0 %v241
    %697 = vmatprep.subr.mxu0 0.0
    %698 = vmatpush2.msra.mxu0 0.0
    %699 = vmatprep.subr.mxu0 0.0
    %700 = vmatpush2.msra.mxu0 0.0
    %701 = vmatprep.subr.mxu0 0.0
    %702 = vmatpush2.msra.mxu0 0.0
    %703 = vmatprep.subr.mxu0 0.0
    %704 = vmatpush2.msra.mxu0 0.0
    %705 = vmatprep.subr.mxu0 0.0
    %706 = vmatpush2.msra.mxu0 0.0
    %707 = vmatprep.subr.mxu0 0.0
    %708 = vmatpush2.msra.mxu0 0.0
    %709 = vmatprep.subr.mxu0 0.0
    %710 = vmatpush2.msra.mxu0 0.0
    %711 = vmatprep.subr.mxu0 0.0
    %712 = vmatpush2.msra.mxu0 0.0
    %713 = vmatprep.subr.mxu0 0.0
    %714 = vmatpush2.msra.mxu0 0.0
    %715 = vmatprep.subr.mxu0 0.0
    %716 = vmatpush2.msra.mxu0 0.0
    %717 = vmatprep.subr.mxu0 0.0
    %718 = vmatpush2.msra.mxu0 0.0
    %719 = vmatprep.subr.mxu0 0.0
    %720 = vmatpush2.msra.mxu0 0.0
    %721 = vmatprep.subr.mxu0 0.0
    %722 = vmatpush2.msra.mxu0 0.0
    %723 = vmatprep.subr.mxu0 0.0
    %724 = vmatpush2.msra.mxu0 0.0
    %725 = vmatprep.subr.mxu0 0.0
    %726 = vmatpush2.msra.mxu0 0.0
    %727 = vmatprep.subr.mxu0 0.0
    %728 = vmatpush2.msra.mxu0 0.0
    %729 = vmatprep.mubr.f32.mxu0 0.0
    %730 = vmatmul.mubr.f32.gmra.mxu0 %v663
    %v731 = vpop.f32.mrf.mxu0
    %v732 = vadd.f32 0.0, %v731
    %v733 = vpop.f32.mrf.mxu0
    %v734 = vadd.f32 0.0, %v733
    %735 = vdwg.mxu0
    %736 = vmatprep.subr.mxu0 %v304
    %737 = vmatpush1.msra.mxu0 %v303
    %738 = vmatprep.subr.mxu0 %v300
    %739 = vmatpush1.msra.mxu0 %v299
    %740 = vmatprep.subr.mxu0 %v296
    %741 = vmatpush1.msra.mxu0 %v295
    %742 = vmatprep.subr.mxu0 %v292
    %743 = vmatpush1.msra.mxu0 %v291
    %744 = vmatprep.subr.mxu0 %v288
    %745 = vmatpush1.msra.mxu0 %v287
    %746 = vmatprep.subr.mxu0 %v284
    %747 = vmatpush1.msra.mxu0 %v283
    %748 = vmatprep.subr.mxu0 %v280
    %749 = vmatpush1.msra.mxu0 %v279
    %750 = vmatprep.subr.mxu0 %v276
    %751 = vmatpush1.msra.mxu0 %v275
    %752 = vmatprep.subr.mxu0 %v272
    %753 = vmatpush1.msra.mxu0 %v271
    %754 = vmatprep.subr.mxu0 %v268
    %755 = vmatpush1.msra.mxu0 %v267
    %756 = vmatprep.subr.mxu0 %v264
    %757 = vmatpush1.msra.mxu0 %v263
    %758 = vmatprep.subr.mxu0 %v260
    %759 = vmatpush1.msra.mxu0 %v259
    %760 = vmatprep.subr.mxu0 %v256
    %761 = vmatpush1.msra.mxu0 %v255
    %762 = vmatprep.subr.mxu0 %v252
    %763 = vmatpush1.msra.mxu0 %v251
    %764 = vmatprep.subr.mxu0 %v248
    %765 = vmatpush1.msra.mxu0 %v247
    %766 = vmatprep.subr.mxu0 %v244
    %767 = vmatpush1.msra.mxu0 %v243
    %768 = vmatprep.subr.mxu0 0.0
    %769 = vmatpush2.msra.mxu0 0.0
    %770 = vmatprep.subr.mxu0 0.0
    %771 = vmatpush2.msra.mxu0 0.0
    %772 = vmatprep.subr.mxu0 0.0
    %773 = vmatpush2.msra.mxu0 0.0
    %774 = vmatprep.subr.mxu0 0.0
    %775 = vmatpush2.msra.mxu0 0.0
    %776 = vmatprep.subr.mxu0 0.0
    %777 = vmatpush2.msra.mxu0 0.0
    %778 = vmatprep.subr.mxu0 0.0
    %779 = vmatpush2.msra.mxu0 0.0
    %780 = vmatprep.subr.mxu0 0.0
    %781 = vmatpush2.msra.mxu0 0.0
    %782 = vmatprep.subr.mxu0 0.0
    %783 = vmatpush2.msra.mxu0 0.0
    %784 = vmatprep.subr.mxu0 0.0
    %785 = vmatpush2.msra.mxu0 0.0
    %786 = vmatprep.subr.mxu0 0.0
    %787 = vmatpush2.msra.mxu0 0.0
    %788 = vmatprep.subr.mxu0 0.0
    %789 = vmatpush2.msra.mxu0 0.0
    %790 = vmatprep.subr.mxu0 0.0
    %791 = vmatpush2.msra.mxu0 0.0
    %792 = vmatprep.subr.mxu0 0.0
    %793 = vmatpush2.msra.mxu0 0.0
    %794 = vmatprep.subr.mxu0 0.0
    %795 = vmatpush2.msra.mxu0 0.0
    %796 = vmatprep.subr.mxu0 0.0
    %797 = vmatpush2.msra.mxu0 0.0
    %798 = vmatprep.subr.mxu0 0.0
    %799 = vmatpush2.msra.mxu0 0.0
    %800 = vmatprep.mubr.f32.mxu0 0.0
    %801 = vmatmul.mubr.f32.gmra.mxu0 %v663
    %v802 = vpop.f32.mrf.mxu0
    %v803 = vadd.f32 0.0, %v802
    %v804 = vpop.f32.mrf.mxu0
    %v805 = vadd.f32 0.0, %v804
    %806 = vdwg.mxu0
    %v811 = vrot.slane %v732, 6
    %v812 = vrot.slane %v734, 6
    %v813 = vrot.slane %v803, 6
    %v814 = vrot.slane %v805, 6
    %v819 = vadd.f32 %v166, %v811
    %v820 = vadd.f32 %v168, %v812
    %v821 = vadd.f32 %v237, %v813
    %v822 = vadd.f32 %v239, %v814
    %v823 = vxor.u32 %v819, 2147483648
    %v824 = vxor.u32 %v820, 2147483648
    %v825 = vmul.f32 %v823, 1.442695
    %v826 = vpow.pop %v825
    %v827 = vmul.f32 %v824, 1.442695
    %v828 = vpow.pop %v827
    %v829 = vadd.f32 %v826, 1.0
    %v830 = vadd.f32 %v828, 1.0
    %v831 = vrcp.pop %v829
    %v832 = vmul.f32 1.0, %v831
    %v833 = vrcp.pop %v830
    %v834 = vmul.f32 1.0, %v833
    %v835 = vtanh.pop %v821
    %v836 = vxor.u32 %v822, 2147483648
    %v837 = vmul.f32 %v836, 1.442695
    %v838 = vpow.pop %v837
    %v839 = vadd.f32 %v838, 1.0
    %v840 = vrcp.pop %v839
    %v841 = vmul.f32 1.0, %v840
    %v843 = vrot.slane %v658, 7
    %v845 = vmul.f32 %v834, %v843
    %v846 = vmul.f32 %v832, %v835
    %v847 = vadd.f32 %v845, %v846
    %v848 = vtanh.pop %v847
    %v849 = vmul.f32 %v841, %v848
    %850 = vst [vmem:[#allocation2] sm:$0x4] %v849
    %v852 = vrot.slane %v849, 2
    %854 = vmatprep.subr.mxu0 %v302
    %855 = vmatpush1.msra.mxu0 %v301
    %856 = vmatprep.subr.mxu0 %v298
    %857 = vmatpush1.msra.mxu0 %v297
    %858 = vmatprep.subr.mxu0 %v294
    %859 = vmatpush1.msra.mxu0 %v293
    %860 = vmatprep.subr.mxu0 %v290
    %861 = vmatpush1.msra.mxu0 %v289
    %862 = vmatprep.subr.mxu0 %v286
    %863 = vmatpush1.msra.mxu0 %v285
    %864 = vmatprep.subr.mxu0 %v282
    %865 = vmatpush1.msra.mxu0 %v281
    %866 = vmatprep.subr.mxu0 %v278
    %867 = vmatpush1.msra.mxu0 %v277
    %868 = vmatprep.subr.mxu0 %v274
    %869 = vmatpush1.msra.mxu0 %v273
    %870 = vmatprep.subr.mxu0 %v270
    %871 = vmatpush1.msra.mxu0 %v269
    %872 = vmatprep.subr.mxu0 %v266
    %873 = vmatpush1.msra.mxu0 %v265
    %874 = vmatprep.subr.mxu0 %v262
    %875 = vmatpush1.msra.mxu0 %v261
    %876 = vmatprep.subr.mxu0 %v258
    %877 = vmatpush1.msra.mxu0 %v257
    %878 = vmatprep.subr.mxu0 %v254
    %879 = vmatpush1.msra.mxu0 %v253
    %880 = vmatprep.subr.mxu0 %v250
    %881 = vmatpush1.msra.mxu0 %v249
    %882 = vmatprep.subr.mxu0 %v246
    %883 = vmatpush1.msra.mxu0 %v245
    %884 = vmatprep.subr.mxu0 %v242
    %885 = vmatpush1.msra.mxu0 %v241
    %886 = vmatprep.subr.mxu0 0.0
    %887 = vmatpush2.msra.mxu0 0.0
    %888 = vmatprep.subr.mxu0 0.0
    %889 = vmatpush2.msra.mxu0 0.0
    %890 = vmatprep.subr.mxu0 0.0
    %891 = vmatpush2.msra.mxu0 0.0
    %892 = vmatprep.subr.mxu0 0.0
    %893 = vmatpush2.msra.mxu0 0.0
    %894 = vmatprep.subr.mxu0 0.0
    %895 = vmatpush2.msra.mxu0 0.0
    %896 = vmatprep.subr.mxu0 0.0
    %897 = vmatpush2.msra.mxu0 0.0
    %898 = vmatprep.subr.mxu0 0.0
    %899 = vmatpush2.msra.mxu0 0.0
    %900 = vmatprep.subr.mxu0 0.0
    %901 = vmatpush2.msra.mxu0 0.0
    %902 = vmatprep.subr.mxu0 0.0
    %903 = vmatpush2.msra.mxu0 0.0
    %904 = vmatprep.subr.mxu0 0.0
    %905 = vmatpush2.msra.mxu0 0.0
    %906 = vmatprep.subr.mxu0 0.0
    %907 = vmatpush2.msra.mxu0 0.0
    %908 = vmatprep.subr.mxu0 0.0
    %909 = vmatpush2.msra.mxu0 0.0
    %910 = vmatprep.subr.mxu0 0.0
    %911 = vmatpush2.msra.mxu0 0.0
    %912 = vmatprep.subr.mxu0 0.0
    %913 = vmatpush2.msra.mxu0 0.0
    %914 = vmatprep.subr.mxu0 0.0
    %915 = vmatpush2.msra.mxu0 0.0
    %916 = vmatprep.subr.mxu0 0.0
    %917 = vmatpush2.msra.mxu0 0.0
    %918 = vmatprep.mubr.f32.mxu0 0.0
    %919 = vmatmul.mubr.f32.gmra.mxu0 %v852
    %v920 = vpop.f32.mrf.mxu0
    %v921 = vadd.f32 0.0, %v920
    %v922 = vpop.f32.mrf.mxu0
    %v923 = vadd.f32 0.0, %v922
    %924 = vdwg.mxu0
    %925 = vmatprep.subr.mxu0 %v304
    %926 = vmatpush1.msra.mxu0 %v303
    %927 = vmatprep.subr.mxu0 %v300
    %928 = vmatpush1.msra.mxu0 %v299
    %929 = vmatprep.subr.mxu0 %v296
    %930 = vmatpush1.msra.mxu0 %v295
    %931 = vmatprep.subr.mxu0 %v292
    %932 = vmatpush1.msra.mxu0 %v291
    %933 = vmatprep.subr.mxu0 %v288
    %934 = vmatpush1.msra.mxu0 %v287
    %935 = vmatprep.subr.mxu0 %v284
    %936 = vmatpush1.msra.mxu0 %v283
    %937 = vmatprep.subr.mxu0 %v280
    %938 = vmatpush1.msra.mxu0 %v279
    %939 = vmatprep.subr.mxu0 %v276
    %940 = vmatpush1.msra.mxu0 %v275
    %941 = vmatprep.subr.mxu0 %v272
    %942 = vmatpush1.msra.mxu0 %v271
    %943 = vmatprep.subr.mxu0 %v268
    %944 = vmatpush1.msra.mxu0 %v267
    %945 = vmatprep.subr.mxu0 %v264
    %946 = vmatpush1.msra.mxu0 %v263
    %947 = vmatprep.subr.mxu0 %v260
    %948 = vmatpush1.msra.mxu0 %v259
    %949 = vmatprep.subr.mxu0 %v256
    %950 = vmatpush1.msra.mxu0 %v255
    %951 = vmatprep.subr.mxu0 %v252
    %952 = vmatpush1.msra.mxu0 %v251
    %953 = vmatprep.subr.mxu0 %v248
    %954 = vmatpush1.msra.mxu0 %v247
    %955 = vmatprep.subr.mxu0 %v244
    %956 = vmatpush1.msra.mxu0 %v243
    %957 = vmatprep.subr.mxu0 0.0
    %958 = vmatpush2.msra.mxu0 0.0
    %959 = vmatprep.subr.mxu0 0.0
    %960 = vmatpush2.msra.mxu0 0.0
    %961 = vmatprep.subr.mxu0 0.0
    %962 = vmatpush2.msra.mxu0 0.0
    %963 = vmatprep.subr.mxu0 0.0
    %964 = vmatpush2.msra.mxu0 0.0
    %965 = vmatprep.subr.mxu0 0.0
    %966 = vmatpush2.msra.mxu0 0.0
    %967 = vmatprep.subr.mxu0 0.0
    %968 = vmatpush2.msra.mxu0 0.0
    %969 = vmatprep.subr.mxu0 0.0
    %970 = vmatpush2.msra.mxu0 0.0
    %971 = vmatprep.subr.mxu0 0.0
    %972 = vmatpush2.msra.mxu0 0.0
    %973 = vmatprep.subr.mxu0 0.0
    %974 = vmatpush2.msra.mxu0 0.0
    %975 = vmatprep.subr.mxu0 0.0
    %976 = vmatpush2.msra.mxu0 0.0
    %977 = vmatprep.subr.mxu0 0.0
    %978 = vmatpush2.msra.mxu0 0.0
    %979 = vmatprep.subr.mxu0 0.0
    %980 = vmatpush2.msra.mxu0 0.0
    %981 = vmatprep.subr.mxu0 0.0
    %982 = vmatpush2.msra.mxu0 0.0
    %983 = vmatprep.subr.mxu0 0.0
    %984 = vmatpush2.msra.mxu0 0.0
    %985 = vmatprep.subr.mxu0 0.0
    %986 = vmatpush2.msra.mxu0 0.0
    %987 = vmatprep.subr.mxu0 0.0
    %988 = vmatpush2.msra.mxu0 0.0
    %989 = vmatprep.mubr.f32.mxu0 0.0
    %990 = vmatmul.mubr.f32.gmra.mxu0 %v852
    %v991 = vpop.f32.mrf.mxu0
    %v992 = vadd.f32 0.0, %v991
    %v993 = vpop.f32.mrf.mxu0
    %v994 = vadd.f32 0.0, %v993
    %995 = vdwg.mxu0
    %v1000 = vrot.slane %v921, 5
    %v1001 = vrot.slane %v923, 5
    %v1002 = vrot.slane %v992, 5
    %v1003 = vrot.slane %v994, 5
    %v1008 = vadd.f32 %v166, %v1000
    %v1009 = vadd.f32 %v168, %v1001
    %v1010 = vadd.f32 %v237, %v1002
    %v1011 = vadd.f32 %v239, %v1003
    %v1012 = vxor.u32 %v1008, 2147483648
    %v1013 = vxor.u32 %v1009, 2147483648
    %v1014 = vmul.f32 %v1012, 1.442695
    %v1015 = vpow.pop %v1014
    %v1016 = vmul.f32 %v1013, 1.442695
    %v1017 = vpow.pop %v1016
    %v1018 = vadd.f32 %v1015, 1.0
    %v1019 = vadd.f32 %v1017, 1.0
    %v1020 = vrcp.pop %v1018
    %v1021 = vmul.f32 1.0, %v1020
    %v1022 = vrcp.pop %v1019
    %v1023 = vmul.f32 1.0, %v1022
    %v1024 = vtanh.pop %v1010
    %v1025 = vxor.u32 %v1011, 2147483648
    %v1026 = vmul.f32 %v1025, 1.442695
    %v1027 = vpow.pop %v1026
    %v1028 = vadd.f32 %v1027, 1.0
    %v1029 = vrcp.pop %v1028
    %v1030 = vmul.f32 1.0, %v1029
    %v1032 = vrot.slane %v847, 7
    %v1034 = vmul.f32 %v1023, %v1032
    %v1035 = vmul.f32 %v1021, %v1024
    %v1036 = vadd.f32 %v1034, %v1035
    %v1037 = vtanh.pop %v1036
    %v1038 = vmul.f32 %v1030, %v1037
    %1039 = vst [vmem:[#allocation2] sm:$0x8] %v1038
    %v1041 = vrot.slane %v1038, 3
    %1043 = vmatprep.subr.mxu0 %v302
    %1044 = vmatpush1.msra.mxu0 %v301
    %1045 = vmatprep.subr.mxu0 %v298
    %1046 = vmatpush1.msra.mxu0 %v297
    %1047 = vmatprep.subr.mxu0 %v294
    %1048 = vmatpush1.msra.mxu0 %v293
    %1049 = vmatprep.subr.mxu0 %v290
    %1050 = vmatpush1.msra.mxu0 %v289
    %1051 = vmatprep.subr.mxu0 %v286
    %1052 = vmatpush1.msra.mxu0 %v285
    %1053 = vmatprep.subr.mxu0 %v282
    %1054 = vmatpush1.msra.mxu0 %v281
    %1055 = vmatprep.subr.mxu0 %v278
    %1056 = vmatpush1.msra.mxu0 %v277
    %1057 = vmatprep.subr.mxu0 %v274
    %1058 = vmatpush1.msra.mxu0 %v273
    %1059 = vmatprep.subr.mxu0 %v270
    %1060 = vmatpush1.msra.mxu0 %v269
    %1061 = vmatprep.subr.mxu0 %v266
    %1062 = vmatpush1.msra.mxu0 %v265
    %1063 = vmatprep.subr.mxu0 %v262
    %1064 = vmatpush1.msra.mxu0 %v261
    %1065 = vmatprep.subr.mxu0 %v258
    %1066 = vmatpush1.msra.mxu0 %v257
    %1067 = vmatprep.subr.mxu0 %v254
    %1068 = vmatpush1.msra.mxu0 %v253
    %1069 = vmatprep.subr.mxu0 %v250
    %1070 = vmatpush1.msra.mxu0 %v249
    %1071 = vmatprep.subr.mxu0 %v246
    %1072 = vmatpush1.msra.mxu0 %v245
    %1073 = vmatprep.subr.mxu0 %v242
    %1074 = vmatpush1.msra.mxu0 %v241
    %1075 = vmatprep.subr.mxu0 0.0
    %1076 = vmatpush2.msra.mxu0 0.0
    %1077 = vmatprep.subr.mxu0 0.0
    %1078 = vmatpush2.msra.mxu0 0.0
    %1079 = vmatprep.subr.mxu0 0.0
    %1080 = vmatpush2.msra.mxu0 0.0
    %1081 = vmatprep.subr.mxu0 0.0
    %1082 = vmatpush2.msra.mxu0 0.0
    %1083 = vmatprep.subr.mxu0 0.0
    %1084 = vmatpush2.msra.mxu0 0.0
    %1085 = vmatprep.subr.mxu0 0.0
    %1086 = vmatpush2.msra.mxu0 0.0
    %1087 = vmatprep.subr.mxu0 0.0
    %1088 = vmatpush2.msra.mxu0 0.0
    %1089 = vmatprep.subr.mxu0 0.0
    %1090 = vmatpush2.msra.mxu0 0.0
    %1091 = vmatprep.subr.mxu0 0.0
    %1092 = vmatpush2.msra.mxu0 0.0
    %1093 = vmatprep.subr.mxu0 0.0
    %1094 = vmatpush2.msra.mxu0 0.0
    %1095 = vmatprep.subr.mxu0 0.0
    %1096 = vmatpush2.msra.mxu0 0.0
    %1097 = vmatprep.subr.mxu0 0.0
    %1098 = vmatpush2.msra.mxu0 0.0
    %1099 = vmatprep.subr.mxu0 0.0
    %1100 = vmatpush2.msra.mxu0 0.0
    %1101 = vmatprep.subr.mxu0 0.0
    %1102 = vmatpush2.msra.mxu0 0.0
    %1103 = vmatprep.subr.mxu0 0.0
    %1104 = vmatpush2.msra.mxu0 0.0
    %1105 = vmatprep.subr.mxu0 0.0
    %1106 = vmatpush2.msra.mxu0 0.0
    %1107 = vmatprep.mubr.f32.mxu0 0.0
    %1108 = vmatmul.mubr.f32.gmra.mxu0 %v1041
    %v1109 = vpop.f32.mrf.mxu0
    %v1110 = vadd.f32 0.0, %v1109
    %v1111 = vpop.f32.mrf.mxu0
    %v1112 = vadd.f32 0.0, %v1111
    %1113 = vdwg.mxu0
    %1114 = vmatprep.subr.mxu0 %v304
    %1115 = vmatpush1.msra.mxu0 %v303
    %1116 = vmatprep.subr.mxu0 %v300
    %1117 = vmatpush1.msra.mxu0 %v299
    %1118 = vmatprep.subr.mxu0 %v296
    %1119 = vmatpush1.msra.mxu0 %v295
    %1120 = vmatprep.subr.mxu0 %v292
    %1121 = vmatpush1.msra.mxu0 %v291
    %1122 = vmatprep.subr.mxu0 %v288
    %1123 = vmatpush1.msra.mxu0 %v287
    %1124 = vmatprep.subr.mxu0 %v284
    %1125 = vmatpush1.msra.mxu0 %v283
    %1126 = vmatprep.subr.mxu0 %v280
    %1127 = vmatpush1.msra.mxu0 %v279
    %1128 = vmatprep.subr.mxu0 %v276
    %1129 = vmatpush1.msra.mxu0 %v275
    %1130 = vmatprep.subr.mxu0 %v272
    %1131 = vmatpush1.msra.mxu0 %v271
    %1132 = vmatprep.subr.mxu0 %v268
    %1133 = vmatpush1.msra.mxu0 %v267
    %1134 = vmatprep.subr.mxu0 %v264
    %1135 = vmatpush1.msra.mxu0 %v263
    %1136 = vmatprep.subr.mxu0 %v260
    %1137 = vmatpush1.msra.mxu0 %v259
    %1138 = vmatprep.subr.mxu0 %v256
    %1139 = vmatpush1.msra.mxu0 %v255
    %1140 = vmatprep.subr.mxu0 %v252
    %1141 = vmatpush1.msra.mxu0 %v251
    %1142 = vmatprep.subr.mxu0 %v248
    %1143 = vmatpush1.msra.mxu0 %v247
    %1144 = vmatprep.subr.mxu0 %v244
    %1145 = vmatpush1.msra.mxu0 %v243
    %1146 = vmatprep.subr.mxu0 0.0
    %1147 = vmatpush2.msra.mxu0 0.0
    %1148 = vmatprep.subr.mxu0 0.0
    %1149 = vmatpush2.msra.mxu0 0.0
    %1150 = vmatprep.subr.mxu0 0.0
    %1151 = vmatpush2.msra.mxu0 0.0
    %1152 = vmatprep.subr.mxu0 0.0
    %1153 = vmatpush2.msra.mxu0 0.0
    %1154 = vmatprep.subr.mxu0 0.0
    %1155 = vmatpush2.msra.mxu0 0.0
    %1156 = vmatprep.subr.mxu0 0.0
    %1157 = vmatpush2.msra.mxu0 0.0
    %1158 = vmatprep.subr.mxu0 0.0
    %1159 = vmatpush2.msra.mxu0 0.0
    %1160 = vmatprep.subr.mxu0 0.0
    %1161 = vmatpush2.msra.mxu0 0.0
    %1162 = vmatprep.subr.mxu0 0.0
    %1163 = vmatpush2.msra.mxu0 0.0
    %1164 = vmatprep.subr.mxu0 0.0
    %1165 = vmatpush2.msra.mxu0 0.0
    %1166 = vmatprep.subr.mxu0 0.0
    %1167 = vmatpush2.msra.mxu0 0.0
    %1168 = vmatprep.subr.mxu0 0.0
    %1169 = vmatpush2.msra.mxu0 0.0
    %1170 = vmatprep.subr.mxu0 0.0
    %1171 = vmatpush2.msra.mxu0 0.0
    %1172 = vmatprep.subr.mxu0 0.0
    %1173 = vmatpush2.msra.mxu0 0.0
    %1174 = vmatprep.subr.mxu0 0.0
    %1175 = vmatpush2.msra.mxu0 0.0
    %1176 = vmatprep.subr.mxu0 0.0
    %1177 = vmatpush2.msra.mxu0 0.0
    %1178 = vmatprep.mubr.f32.mxu0 0.0
    %1179 = vmatmul.mubr.f32.gmra.mxu0 %v1041
    %v1180 = vpop.f32.mrf.mxu0
    %v1181 = vadd.f32 0.0, %v1180
    %v1182 = vpop.f32.mrf.mxu0
    %v1183 = vadd.f32 0.0, %v1182
    %1184 = vdwg.mxu0
    %v1189 = vrot.slane %v1110, 4
    %v1190 = vrot.slane %v1112, 4
    %v1191 = vrot.slane %v1181, 4
    %v1192 = vrot.slane %v1183, 4
    %v1197 = vadd.f32 %v166, %v1189
    %v1198 = vadd.f32 %v168, %v1190
    %v1199 = vadd.f32 %v237, %v1191
    %v1200 = vadd.f32 %v239, %v1192
    %v1201 = vxor.u32 %v1197, 2147483648
    %v1202 = vxor.u32 %v1198, 2147483648
    %v1203 = vmul.f32 %v1201, 1.442695
    %v1204 = vpow.pop %v1203
    %v1205 = vmul.f32 %v1202, 1.442695
    %v1206 = vpow.pop %v1205
    %v1207 = vadd.f32 %v1204, 1.0
    %v1208 = vadd.f32 %v1206, 1.0
    %v1209 = vrcp.pop %v1207
    %v1210 = vmul.f32 1.0, %v1209
    %v1211 = vrcp.pop %v1208
    %v1212 = vmul.f32 1.0, %v1211
    %v1213 = vtanh.pop %v1199
    %v1214 = vxor.u32 %v1200, 2147483648
    %v1215 = vmul.f32 %v1214, 1.442695
    %v1216 = vpow.pop %v1215
    %v1217 = vadd.f32 %v1216, 1.0
    %v1218 = vrcp.pop %v1217
    %v1219 = vmul.f32 1.0, %v1218
    %v1221 = vrot.slane %v1036, 7
    %v1223 = vmul.f32 %v1212, %v1221
    %v1224 = vmul.f32 %v1210, %v1213
    %v1225 = vadd.f32 %v1223, %v1224
    %v1226 = vtanh.pop %v1225
    %v1227 = vmul.f32 %v1219, %v1226
    %1228 = vst [vmem:[#allocation2] sm:$0x10] %v1227
    %v1230 = vrot.slane %v1227, 4
    %1232 = vmatprep.subr.mxu0 %v302
    %1233 = vmatpush1.msra.mxu0 %v301
    %1234 = vmatprep.subr.mxu0 %v298
    %1235 = vmatpush1.msra.mxu0 %v297
    %1236 = vmatprep.subr.mxu0 %v294
    %1237 = vmatpush1.msra.mxu0 %v293
    %1238 = vmatprep.subr.mxu0 %v290
    %1239 = vmatpush1.msra.mxu0 %v289
    %1240 = vmatprep.subr.mxu0 %v286
    %1241 = vmatpush1.msra.mxu0 %v285
    %1242 = vmatprep.subr.mxu0 %v282
    %1243 = vmatpush1.msra.mxu0 %v281
    %1244 = vmatprep.subr.mxu0 %v278
    %1245 = vmatpush1.msra.mxu0 %v277
    %1246 = vmatprep.subr.mxu0 %v274
    %1247 = vmatpush1.msra.mxu0 %v273
    %1248 = vmatprep.subr.mxu0 %v270
    %1249 = vmatpush1.msra.mxu0 %v269
    %1250 = vmatprep.subr.mxu0 %v266
    %1251 = vmatpush1.msra.mxu0 %v265
    %1252 = vmatprep.subr.mxu0 %v262
    %1253 = vmatpush1.msra.mxu0 %v261
    %1254 = vmatprep.subr.mxu0 %v258
    %1255 = vmatpush1.msra.mxu0 %v257
    %1256 = vmatprep.subr.mxu0 %v254
    %1257 = vmatpush1.msra.mxu0 %v253
    %1258 = vmatprep.subr.mxu0 %v250
    %1259 = vmatpush1.msra.mxu0 %v249
    %1260 = vmatprep.subr.mxu0 %v246
    %1261 = vmatpush1.msra.mxu0 %v245
    %1262 = vmatprep.subr.mxu0 %v242
    %1263 = vmatpush1.msra.mxu0 %v241
    %1264 = vmatprep.subr.mxu0 0.0
    %1265 = vmatpush2.msra.mxu0 0.0
    %1266 = vmatprep.subr.mxu0 0.0
    %1267 = vmatpush2.msra.mxu0 0.0
    %1268 = vmatprep.subr.mxu0 0.0
    %1269 = vmatpush2.msra.mxu0 0.0
    %1270 = vmatprep.subr.mxu0 0.0
    %1271 = vmatpush2.msra.mxu0 0.0
    %1272 = vmatprep.subr.mxu0 0.0
    %1273 = vmatpush2.msra.mxu0 0.0
    %1274 = vmatprep.subr.mxu0 0.0
    %1275 = vmatpush2.msra.mxu0 0.0
    %1276 = vmatprep.subr.mxu0 0.0
    %1277 = vmatpush2.msra.mxu0 0.0
    %1278 = vmatprep.subr.mxu0 0.0
    %1279 = vmatpush2.msra.mxu0 0.0
    %1280 = vmatprep.subr.mxu0 0.0
    %1281 = vmatpush2.msra.mxu0 0.0
    %1282 = vmatprep.subr.mxu0 0.0
    %1283 = vmatpush2.msra.mxu0 0.0
    %1284 = vmatprep.subr.mxu0 0.0
    %1285 = vmatpush2.msra.mxu0 0.0
    %1286 = vmatprep.subr.mxu0 0.0
    %1287 = vmatpush2.msra.mxu0 0.0
    %1288 = vmatprep.subr.mxu0 0.0
    %1289 = vmatpush2.msra.mxu0 0.0
    %1290 = vmatprep.subr.mxu0 0.0
    %1291 = vmatpush2.msra.mxu0 0.0
    %1292 = vmatprep.subr.mxu0 0.0
    %1293 = vmatpush2.msra.mxu0 0.0
    %1294 = vmatprep.subr.mxu0 0.0
    %1295 = vmatpush2.msra.mxu0 0.0
    %1296 = vmatprep.mubr.f32.mxu0 0.0
    %1297 = vmatmul.mubr.f32.gmra.mxu0 %v1230
    %v1298 = vpop.f32.mrf.mxu0
    %v1299 = vadd.f32 0.0, %v1298
    %v1300 = vpop.f32.mrf.mxu0
    %v1301 = vadd.f32 0.0, %v1300
    %1302 = vdwg.mxu0
    %1303 = vmatprep.subr.mxu0 %v304
    %1304 = vmatpush1.msra.mxu0 %v303
    %1305 = vmatprep.subr.mxu0 %v300
    %1306 = vmatpush1.msra.mxu0 %v299
    %1307 = vmatprep.subr.mxu0 %v296
    %1308 = vmatpush1.msra.mxu0 %v295
    %1309 = vmatprep.subr.mxu0 %v292
    %1310 = vmatpush1.msra.mxu0 %v291
    %1311 = vmatprep.subr.mxu0 %v288
    %1312 = vmatpush1.msra.mxu0 %v287
    %1313 = vmatprep.subr.mxu0 %v284
    %1314 = vmatpush1.msra.mxu0 %v283
    %1315 = vmatprep.subr.mxu0 %v280
    %1316 = vmatpush1.msra.mxu0 %v279
    %1317 = vmatprep.subr.mxu0 %v276
    %1318 = vmatpush1.msra.mxu0 %v275
    %1319 = vmatprep.subr.mxu0 %v272
    %1320 = vmatpush1.msra.mxu0 %v271
    %1321 = vmatprep.subr.mxu0 %v268
    %1322 = vmatpush1.msra.mxu0 %v267
    %1323 = vmatprep.subr.mxu0 %v264
    %1324 = vmatpush1.msra.mxu0 %v263
    %1325 = vmatprep.subr.mxu0 %v260
    %1326 = vmatpush1.msra.mxu0 %v259
    %1327 = vmatprep.subr.mxu0 %v256
    %1328 = vmatpush1.msra.mxu0 %v255
    %1329 = vmatprep.subr.mxu0 %v252
    %1330 = vmatpush1.msra.mxu0 %v251
    %1331 = vmatprep.subr.mxu0 %v248
    %1332 = vmatpush1.msra.mxu0 %v247
    %1333 = vmatprep.subr.mxu0 %v244
    %1334 = vmatpush1.msra.mxu0 %v243
    %1335 = vmatprep.subr.mxu0 0.0
    %1336 = vmatpush2.msra.mxu0 0.0
    %1337 = vmatprep.subr.mxu0 0.0
    %1338 = vmatpush2.msra.mxu0 0.0
    %1339 = vmatprep.subr.mxu0 0.0
    %1340 = vmatpush2.msra.mxu0 0.0
    %1341 = vmatprep.subr.mxu0 0.0
    %1342 = vmatpush2.msra.mxu0 0.0
    %1343 = vmatprep.subr.mxu0 0.0
    %1344 = vmatpush2.msra.mxu0 0.0
    %1345 = vmatprep.subr.mxu0 0.0
    %1346 = vmatpush2.msra.mxu0 0.0
    %1347 = vmatprep.subr.mxu0 0.0
    %1348 = vmatpush2.msra.mxu0 0.0
    %1349 = vmatprep.subr.mxu0 0.0
    %1350 = vmatpush2.msra.mxu0 0.0
    %1351 = vmatprep.subr.mxu0 0.0
    %1352 = vmatpush2.msra.mxu0 0.0
    %1353 = vmatprep.subr.mxu0 0.0
    %1354 = vmatpush2.msra.mxu0 0.0
    %1355 = vmatprep.subr.mxu0 0.0
    %1356 = vmatpush2.msra.mxu0 0.0
    %1357 = vmatprep.subr.mxu0 0.0
    %1358 = vmatpush2.msra.mxu0 0.0
    %1359 = vmatprep.subr.mxu0 0.0
    %1360 = vmatpush2.msra.mxu0 0.0
    %1361 = vmatprep.subr.mxu0 0.0
    %1362 = vmatpush2.msra.mxu0 0.0
    %1363 = vmatprep.subr.mxu0 0.0
    %1364 = vmatpush2.msra.mxu0 0.0
    %1365 = vmatprep.subr.mxu0 0.0
    %1366 = vmatpush2.msra.mxu0 0.0
    %1367 = vmatprep.mubr.f32.mxu0 0.0
    %1368 = vmatmul.mubr.f32.gmra.mxu0 %v1230
    %v1369 = vpop.f32.mrf.mxu0
    %v1370 = vadd.f32 0.0, %v1369
    %v1371 = vpop.f32.mrf.mxu0
    %v1372 = vadd.f32 0.0, %v1371
    %1373 = vdwg.mxu0
    %v1378 = vrot.slane %v1299, 3
    %v1379 = vrot.slane %v1301, 3
    %v1380 = vrot.slane %v1370, 3
    %v1381 = vrot.slane %v1372, 3
    %v1386 = vadd.f32 %v166, %v1378
    %v1387 = vadd.f32 %v168, %v1379
    %v1388 = vadd.f32 %v237, %v1380
    %v1389 = vadd.f32 %v239, %v1381
    %v1390 = vxor.u32 %v1386, 2147483648
    %v1391 = vxor.u32 %v1387, 2147483648
    %v1392 = vmul.f32 %v1390, 1.442695
    %v1393 = vpow.pop %v1392
    %v1394 = vmul.f32 %v1391, 1.442695
    %v1395 = vpow.pop %v1394
    %v1396 = vadd.f32 %v1393, 1.0
    %v1397 = vadd.f32 %v1395, 1.0
    %v1398 = vrcp.pop %v1396
    %v1399 = vmul.f32 1.0, %v1398
    %v1400 = vrcp.pop %v1397
    %v1401 = vmul.f32 1.0, %v1400
    %v1402 = vtanh.pop %v1388
    %v1403 = vxor.u32 %v1389, 2147483648
    %v1404 = vmul.f32 %v1403, 1.442695
    %v1405 = vpow.pop %v1404
    %v1406 = vadd.f32 %v1405, 1.0
    %v1407 = vrcp.pop %v1406
    %v1408 = vmul.f32 1.0, %v1407
    %v1410 = vrot.slane %v1225, 7
    %v1412 = vmul.f32 %v1401, %v1410
    %v1413 = vmul.f32 %v1399, %v1402
    %v1414 = vadd.f32 %v1412, %v1413
    %v1415 = vtanh.pop %v1414
    %v1416 = vmul.f32 %v1408, %v1415
    %1417 = vst [vmem:[#allocation2] sm:$0x20] %v1416
    %v1419 = vrot.slane %v1416, 5
    %1421 = vmatprep.subr.mxu0 %v302
    %1422 = vmatpush1.msra.mxu0 %v301
    %1423 = vmatprep.subr.mxu0 %v298
    %1424 = vmatpush1.msra.mxu0 %v297
    %1425 = vmatprep.subr.mxu0 %v294
    %1426 = vmatpush1.msra.mxu0 %v293
    %1427 = vmatprep.subr.mxu0 %v290
    %1428 = vmatpush1.msra.mxu0 %v289
    %1429 = vmatprep.subr.mxu0 %v286
    %1430 = vmatpush1.msra.mxu0 %v285
    %1431 = vmatprep.subr.mxu0 %v282
    %1432 = vmatpush1.msra.mxu0 %v281
    %1433 = vmatprep.subr.mxu0 %v278
    %1434 = vmatpush1.msra.mxu0 %v277
    %1435 = vmatprep.subr.mxu0 %v274
    %1436 = vmatpush1.msra.mxu0 %v273
    %1437 = vmatprep.subr.mxu0 %v270
    %1438 = vmatpush1.msra.mxu0 %v269
    %1439 = vmatprep.subr.mxu0 %v266
    %1440 = vmatpush1.msra.mxu0 %v265
    %1441 = vmatprep.subr.mxu0 %v262
    %1442 = vmatpush1.msra.mxu0 %v261
    %1443 = vmatprep.subr.mxu0 %v258
    %1444 = vmatpush1.msra.mxu0 %v257
    %1445 = vmatprep.subr.mxu0 %v254
    %1446 = vmatpush1.msra.mxu0 %v253
    %1447 = vmatprep.subr.mxu0 %v250
    %1448 = vmatpush1.msra.mxu0 %v249
    %1449 = vmatprep.subr.mxu0 %v246
    %1450 = vmatpush1.msra.mxu0 %v245
    %1451 = vmatprep.subr.mxu0 %v242
    %1452 = vmatpush1.msra.mxu0 %v241
    %1453 = vmatprep.subr.mxu0 0.0
    %1454 = vmatpush2.msra.mxu0 0.0
    %1455 = vmatprep.subr.mxu0 0.0
    %1456 = vmatpush2.msra.mxu0 0.0
    %1457 = vmatprep.subr.mxu0 0.0
    %1458 = vmatpush2.msra.mxu0 0.0
    %1459 = vmatprep.subr.mxu0 0.0
    %1460 = vmatpush2.msra.mxu0 0.0
    %1461 = vmatprep.subr.mxu0 0.0
    %1462 = vmatpush2.msra.mxu0 0.0
    %1463 = vmatprep.subr.mxu0 0.0
    %1464 = vmatpush2.msra.mxu0 0.0
    %1465 = vmatprep.subr.mxu0 0.0
    %1466 = vmatpush2.msra.mxu0 0.0
    %1467 = vmatprep.subr.mxu0 0.0
    %1468 = vmatpush2.msra.mxu0 0.0
    %1469 = vmatprep.subr.mxu0 0.0
    %1470 = vmatpush2.msra.mxu0 0.0
    %1471 = vmatprep.subr.mxu0 0.0
    %1472 = vmatpush2.msra.mxu0 0.0
    %1473 = vmatprep.subr.mxu0 0.0
    %1474 = vmatpush2.msra.mxu0 0.0
    %1475 = vmatprep.subr.mxu0 0.0
    %1476 = vmatpush2.msra.mxu0 0.0
    %1477 = vmatprep.subr.mxu0 0.0
    %1478 = vmatpush2.msra.mxu0 0.0
    %1479 = vmatprep.subr.mxu0 0.0
    %1480 = vmatpush2.msra.mxu0 0.0
    %1481 = vmatprep.subr.mxu0 0.0
    %1482 = vmatpush2.msra.mxu0 0.0
    %1483 = vmatprep.subr.mxu0 0.0
    %1484 = vmatpush2.msra.mxu0 0.0
    %1485 = vmatprep.mubr.f32.mxu0 0.0
    %1486 = vmatmul.mubr.f32.gmra.mxu0 %v1419
    %v1487 = vpop.f32.mrf.mxu0
    %v1488 = vadd.f32 0.0, %v1487
    %v1489 = vpop.f32.mrf.mxu0
    %v1490 = vadd.f32 0.0, %v1489
    %1491 = vdwg.mxu0
    %1492 = vmatprep.subr.mxu0 %v304
    %1493 = vmatpush1.msra.mxu0 %v303
    %1494 = vmatprep.subr.mxu0 %v300
    %1495 = vmatpush1.msra.mxu0 %v299
    %1496 = vmatprep.subr.mxu0 %v296
    %1497 = vmatpush1.msra.mxu0 %v295
    %1498 = vmatprep.subr.mxu0 %v292
    %1499 = vmatpush1.msra.mxu0 %v291
    %1500 = vmatprep.subr.mxu0 %v288
    %1501 = vmatpush1.msra.mxu0 %v287
    %1502 = vmatprep.subr.mxu0 %v284
    %1503 = vmatpush1.msra.mxu0 %v283
    %1504 = vmatprep.subr.mxu0 %v280
    %1505 = vmatpush1.msra.mxu0 %v279
    %1506 = vmatprep.subr.mxu0 %v276
    %1507 = vmatpush1.msra.mxu0 %v275
    %1508 = vmatprep.subr.mxu0 %v272
    %1509 = vmatpush1.msra.mxu0 %v271
    %1510 = vmatprep.subr.mxu0 %v268
    %1511 = vmatpush1.msra.mxu0 %v267
    %1512 = vmatprep.subr.mxu0 %v264
    %1513 = vmatpush1.msra.mxu0 %v263
    %1514 = vmatprep.subr.mxu0 %v260
    %1515 = vmatpush1.msra.mxu0 %v259
    %1516 = vmatprep.subr.mxu0 %v256
    %1517 = vmatpush1.msra.mxu0 %v255
    %1518 = vmatprep.subr.mxu0 %v252
    %1519 = vmatpush1.msra.mxu0 %v251
    %1520 = vmatprep.subr.mxu0 %v248
    %1521 = vmatpush1.msra.mxu0 %v247
    %1522 = vmatprep.subr.mxu0 %v244
    %1523 = vmatpush1.msra.mxu0 %v243
    %1524 = vmatprep.subr.mxu0 0.0
    %1525 = vmatpush2.msra.mxu0 0.0
    %1526 = vmatprep.subr.mxu0 0.0
    %1527 = vmatpush2.msra.mxu0 0.0
    %1528 = vmatprep.subr.mxu0 0.0
    %1529 = vmatpush2.msra.mxu0 0.0
    %1530 = vmatprep.subr.mxu0 0.0
    %1531 = vmatpush2.msra.mxu0 0.0
    %1532 = vmatprep.subr.mxu0 0.0
    %1533 = vmatpush2.msra.mxu0 0.0
    %1534 = vmatprep.subr.mxu0 0.0
    %1535 = vmatpush2.msra.mxu0 0.0
    %1536 = vmatprep.subr.mxu0 0.0
    %1537 = vmatpush2.msra.mxu0 0.0
    %1538 = vmatprep.subr.mxu0 0.0
    %1539 = vmatpush2.msra.mxu0 0.0
    %1540 = vmatprep.subr.mxu0 0.0
    %1541 = vmatpush2.msra.mxu0 0.0
    %1542 = vmatprep.subr.mxu0 0.0
    %1543 = vmatpush2.msra.mxu0 0.0
    %1544 = vmatprep.subr.mxu0 0.0
    %1545 = vmatpush2.msra.mxu0 0.0
    %1546 = vmatprep.subr.mxu0 0.0
    %1547 = vmatpush2.msra.mxu0 0.0
    %1548 = vmatprep.subr.mxu0 0.0
    %1549 = vmatpush2.msra.mxu0 0.0
    %1550 = vmatprep.subr.mxu0 0.0
    %1551 = vmatpush2.msra.mxu0 0.0
    %1552 = vmatprep.subr.mxu0 0.0
    %1553 = vmatpush2.msra.mxu0 0.0
    %1554 = vmatprep.subr.mxu0 0.0
    %1555 = vmatpush2.msra.mxu0 0.0
    %1556 = vmatprep.mubr.f32.mxu0 0.0
    %1557 = vmatmul.mubr.f32.gmra.mxu0 %v1419
    %v1558 = vpop.f32.mrf.mxu0
    %v1559 = vadd.f32 0.0, %v1558
    %v1560 = vpop.f32.mrf.mxu0
    %v1561 = vadd.f32 0.0, %v1560
    %1562 = vdwg.mxu0
    %v1567 = vrot.slane %v1488, 2
    %v1568 = vrot.slane %v1490, 2
    %v1569 = vrot.slane %v1559, 2
    %v1570 = vrot.slane %v1561, 2
    %v1575 = vadd.f32 %v166, %v1567
    %v1576 = vadd.f32 %v168, %v1568
    %v1577 = vadd.f32 %v237, %v1569
    %v1578 = vadd.f32 %v239, %v1570
    %v1579 = vxor.u32 %v1575, 2147483648
    %v1580 = vxor.u32 %v1576, 2147483648
    %v1581 = vmul.f32 %v1579, 1.442695
    %v1582 = vpow.pop %v1581
    %v1583 = vmul.f32 %v1580, 1.442695
    %v1584 = vpow.pop %v1583
    %v1585 = vadd.f32 %v1582, 1.0
    %v1586 = vadd.f32 %v1584, 1.0
    %v1587 = vrcp.pop %v1585
    %v1588 = vmul.f32 1.0, %v1587
    %v1589 = vrcp.pop %v1586
    %v1590 = vmul.f32 1.0, %v1589
    %v1591 = vtanh.pop %v1577
    %v1592 = vxor.u32 %v1578, 2147483648
    %v1593 = vmul.f32 %v1592, 1.442695
    %v1594 = vpow.pop %v1593
    %v1595 = vadd.f32 %v1594, 1.0
    %v1596 = vrcp.pop %v1595
    %v1597 = vmul.f32 1.0, %v1596
    %v1599 = vrot.slane %v1414, 7
    %v1601 = vmul.f32 %v1590, %v1599
    %v1602 = vmul.f32 %v1588, %v1591
    %v1603 = vadd.f32 %v1601, %v1602
    %v1604 = vtanh.pop %v1603
    %v1605 = vmul.f32 %v1597, %v1604
    %1606 = vst [vmem:[#allocation2] sm:$0x40] %v1605
    %v1608 = vrot.slane %v1605, 6
    %1610 = vmatprep.subr.mxu0 %v302
    %1611 = vmatpush1.msra.mxu0 %v301
    %1612 = vmatprep.subr.mxu0 %v298
    %1613 = vmatpush1.msra.mxu0 %v297
    %1614 = vmatprep.subr.mxu0 %v294
    %1615 = vmatpush1.msra.mxu0 %v293
    %1616 = vmatprep.subr.mxu0 %v290
    %1617 = vmatpush1.msra.mxu0 %v289
    %1618 = vmatprep.subr.mxu0 %v286
    %1619 = vmatpush1.msra.mxu0 %v285
    %1620 = vmatprep.subr.mxu0 %v282
    %1621 = vmatpush1.msra.mxu0 %v281
    %1622 = vmatprep.subr.mxu0 %v278
    %1623 = vmatpush1.msra.mxu0 %v277
    %1624 = vmatprep.subr.mxu0 %v274
    %1625 = vmatpush1.msra.mxu0 %v273
    %1626 = vmatprep.subr.mxu0 %v270
    %1627 = vmatpush1.msra.mxu0 %v269
    %1628 = vmatprep.subr.mxu0 %v266
    %1629 = vmatpush1.msra.mxu0 %v265
    %1630 = vmatprep.subr.mxu0 %v262
    %1631 = vmatpush1.msra.mxu0 %v261
    %1632 = vmatprep.subr.mxu0 %v258
    %1633 = vmatpush1.msra.mxu0 %v257
    %1634 = vmatprep.subr.mxu0 %v254
    %1635 = vmatpush1.msra.mxu0 %v253
    %1636 = vmatprep.subr.mxu0 %v250
    %1637 = vmatpush1.msra.mxu0 %v249
    %1638 = vmatprep.subr.mxu0 %v246
    %1639 = vmatpush1.msra.mxu0 %v245
    %1640 = vmatprep.subr.mxu0 %v242
    %1641 = vmatpush1.msra.mxu0 %v241
    %1642 = vmatprep.subr.mxu0 0.0
    %1643 = vmatpush2.msra.mxu0 0.0
    %1644 = vmatprep.subr.mxu0 0.0
    %1645 = vmatpush2.msra.mxu0 0.0
    %1646 = vmatprep.subr.mxu0 0.0
    %1647 = vmatpush2.msra.mxu0 0.0
    %1648 = vmatprep.subr.mxu0 0.0
    %1649 = vmatpush2.msra.mxu0 0.0
    %1650 = vmatprep.subr.mxu0 0.0
    %1651 = vmatpush2.msra.mxu0 0.0
    %1652 = vmatprep.subr.mxu0 0.0
    %1653 = vmatpush2.msra.mxu0 0.0
    %1654 = vmatprep.subr.mxu0 0.0
    %1655 = vmatpush2.msra.mxu0 0.0
    %1656 = vmatprep.subr.mxu0 0.0
    %1657 = vmatpush2.msra.mxu0 0.0
    %1658 = vmatprep.subr.mxu0 0.0
    %1659 = vmatpush2.msra.mxu0 0.0
    %1660 = vmatprep.subr.mxu0 0.0
    %1661 = vmatpush2.msra.mxu0 0.0
    %1662 = vmatprep.subr.mxu0 0.0
    %1663 = vmatpush2.msra.mxu0 0.0
    %1664 = vmatprep.subr.mxu0 0.0
    %1665 = vmatpush2.msra.mxu0 0.0
    %1666 = vmatprep.subr.mxu0 0.0
    %1667 = vmatpush2.msra.mxu0 0.0
    %1668 = vmatprep.subr.mxu0 0.0
    %1669 = vmatpush2.msra.mxu0 0.0
    %1670 = vmatprep.subr.mxu0 0.0
    %1671 = vmatpush2.msra.mxu0 0.0
    %1672 = vmatprep.subr.mxu0 0.0
    %1673 = vmatpush2.msra.mxu0 0.0
    %1674 = vmatprep.mubr.f32.mxu0 0.0
    %1675 = vmatmul.mubr.f32.gmra.mxu0 %v1608
    %v1676 = vpop.f32.mrf.mxu0
    %v1677 = vadd.f32 0.0, %v1676
    %v1678 = vpop.f32.mrf.mxu0
    %v1679 = vadd.f32 0.0, %v1678
    %1680 = vdwg.mxu0
    %1681 = vmatprep.subr.mxu0 %v304
    %1682 = vmatpush1.msra.mxu0 %v303
    %1683 = vmatprep.subr.mxu0 %v300
    %1684 = vmatpush1.msra.mxu0 %v299
    %1685 = vmatprep.subr.mxu0 %v296
    %1686 = vmatpush1.msra.mxu0 %v295
    %1687 = vmatprep.subr.mxu0 %v292
    %1688 = vmatpush1.msra.mxu0 %v291
    %1689 = vmatprep.subr.mxu0 %v288
    %1690 = vmatpush1.msra.mxu0 %v287
    %1691 = vmatprep.subr.mxu0 %v284
    %1692 = vmatpush1.msra.mxu0 %v283
    %1693 = vmatprep.subr.mxu0 %v280
    %1694 = vmatpush1.msra.mxu0 %v279
    %1695 = vmatprep.subr.mxu0 %v276
    %1696 = vmatpush1.msra.mxu0 %v275
    %1697 = vmatprep.subr.mxu0 %v272
    %1698 = vmatpush1.msra.mxu0 %v271
    %1699 = vmatprep.subr.mxu0 %v268
    %1700 = vmatpush1.msra.mxu0 %v267
    %1701 = vmatprep.subr.mxu0 %v264
    %1702 = vmatpush1.msra.mxu0 %v263
    %1703 = vmatprep.subr.mxu0 %v260
    %1704 = vmatpush1.msra.mxu0 %v259
    %1705 = vmatprep.subr.mxu0 %v256
    %1706 = vmatpush1.msra.mxu0 %v255
    %1707 = vmatprep.subr.mxu0 %v252
    %1708 = vmatpush1.msra.mxu0 %v251
    %1709 = vmatprep.subr.mxu0 %v248
    %1710 = vmatpush1.msra.mxu0 %v247
    %1711 = vmatprep.subr.mxu0 %v244
    %1712 = vmatpush1.msra.mxu0 %v243
    %1713 = vmatprep.subr.mxu0 0.0
    %1714 = vmatpush2.msra.mxu0 0.0
    %1715 = vmatprep.subr.mxu0 0.0
    %1716 = vmatpush2.msra.mxu0 0.0
    %1717 = vmatprep.subr.mxu0 0.0
    %1718 = vmatpush2.msra.mxu0 0.0
    %1719 = vmatprep.subr.mxu0 0.0
    %1720 = vmatpush2.msra.mxu0 0.0
    %1721 = vmatprep.subr.mxu0 0.0
    %1722 = vmatpush2.msra.mxu0 0.0
    %1723 = vmatprep.subr.mxu0 0.0
    %1724 = vmatpush2.msra.mxu0 0.0
    %1725 = vmatprep.subr.mxu0 0.0
    %1726 = vmatpush2.msra.mxu0 0.0
    %1727 = vmatprep.subr.mxu0 0.0
    %1728 = vmatpush2.msra.mxu0 0.0
    %1729 = vmatprep.subr.mxu0 0.0
    %1730 = vmatpush2.msra.mxu0 0.0
    %1731 = vmatprep.subr.mxu0 0.0
    %1732 = vmatpush2.msra.mxu0 0.0
    %1733 = vmatprep.subr.mxu0 0.0
    %1734 = vmatpush2.msra.mxu0 0.0
    %1735 = vmatprep.subr.mxu0 0.0
    %1736 = vmatpush2.msra.mxu0 0.0
    %1737 = vmatprep.subr.mxu0 0.0
    %1738 = vmatpush2.msra.mxu0 0.0
    %1739 = vmatprep.subr.mxu0 0.0
    %1740 = vmatpush2.msra.mxu0 0.0
    %1741 = vmatprep.subr.mxu0 0.0
    %1742 = vmatpush2.msra.mxu0 0.0
    %1743 = vmatprep.subr.mxu0 0.0
    %1744 = vmatpush2.msra.mxu0 0.0
    %1745 = vmatprep.mubr.f32.mxu0 0.0
    %1746 = vmatmul.mubr.f32.gmra.mxu0 %v1608
    %v1747 = vpop.f32.mrf.mxu0
    %v1748 = vadd.f32 0.0, %v1747
    %v1749 = vpop.f32.mrf.mxu0
    %v1750 = vadd.f32 0.0, %v1749
    %1751 = vdwg.mxu0
    %v1756 = vrot.slane %v1677, 1
    %v1757 = vrot.slane %v1679, 1
    %v1758 = vrot.slane %v1748, 1
    %v1759 = vrot.slane %v1750, 1
    %v1764 = vadd.f32 %v166, %v1756
    %v1765 = vadd.f32 %v168, %v1757
    %v1766 = vadd.f32 %v237, %v1758
    %v1767 = vadd.f32 %v239, %v1759
    %v1768 = vxor.u32 %v1764, 2147483648
    %v1769 = vxor.u32 %v1765, 2147483648
    %v1770 = vmul.f32 %v1768, 1.442695
    %v1771 = vpow.pop %v1770
    %v1772 = vmul.f32 %v1769, 1.442695
    %v1773 = vpow.pop %v1772
    %v1774 = vadd.f32 %v1771, 1.0
    %v1775 = vadd.f32 %v1773, 1.0
    %v1776 = vrcp.pop %v1774
    %v1777 = vmul.f32 1.0, %v1776
    %v1778 = vrcp.pop %v1775
    %v1779 = vmul.f32 1.0, %v1778
    %v1780 = vtanh.pop %v1766
    %v1781 = vxor.u32 %v1767, 2147483648
    %v1782 = vmul.f32 %v1781, 1.442695
    %v1783 = vpow.pop %v1782
    %v1784 = vadd.f32 %v1783, 1.0
    %v1785 = vrcp.pop %v1784
    %v1786 = vmul.f32 1.0, %v1785
    %v1788 = vrot.slane %v1603, 7
    %v1790 = vmul.f32 %v1779, %v1788
    %v1791 = vmul.f32 %v1777, %v1780
    %v1792 = vadd.f32 %v1790, %v1791
    %v1793 = vtanh.pop %v1792
    %v1794 = vmul.f32 %v1786, %v1793
    %1795 = vst [vmem:[#allocation2] sm:$0x80] %v1794
    %v1796 = vld [vmem:[#allocation2] sm:$0xff]
    %v1797 = vld [vmem:[#allocation7] sm:$0xff]
    %v1798 = vld [vmem:[#allocation7 + $0x8] sm:$0xff]
    %v1799 = vld [vmem:[#allocation7 + $0x10] sm:$0xff]
    %v1800 = vld [vmem:[#allocation7 + $0x18] sm:$0xff]
    %v1801 = vld [vmem:[#allocation7 + $0x20] sm:$0xff]
    %v1802 = vld [vmem:[#allocation7 + $0x28] sm:$0xff]
    %v1803 = vld [vmem:[#allocation7 + $0x30] sm:$0xff]
    %v1804 = vld [vmem:[#allocation7 + $0x38] sm:$0xff]
    %v1805 = vld [vmem:[#allocation7 + $0x40] sm:$0xff]
    %v1806 = vld [vmem:[#allocation7 + $0x48] sm:$0xff]
    %v1807 = vld [vmem:[#allocation7 + $0x50] sm:$0xff]
    %v1808 = vld [vmem:[#allocation7 + $0x58] sm:$0xff]
    %v1809 = vld [vmem:[#allocation7 + $0x60] sm:$0xff]
    %v1810 = vld [vmem:[#allocation7 + $0x68] sm:$0xff]
    %v1811 = vld [vmem:[#allocation7 + $0x70] sm:$0xff]
    %v1812 = vld [vmem:[#allocation7 + $0x78] sm:$0xff]
    %v1813 = vld [vmem:[%s5] sm:$0x1]
    %v1815 = vlaneseq
    %v1816 = vshrl.u32 %v1815, 7
    %v1817 = vsub.s32 0, %v1816
    %v1818 = vrot.slane %v1813, %v1817
    %1820 = vmatprep.subr.mxu0 0.0
    %1821 = vmatpush1.msra.mxu0 %v1812
    %1822 = vmatprep.subr.mxu0 0.0
    %1823 = vmatpush1.msra.mxu0 %v1811
    %1824 = vmatprep.subr.mxu0 0.0
    %1825 = vmatpush1.msra.mxu0 %v1810
    %1826 = vmatprep.subr.mxu0 0.0
    %1827 = vmatpush1.msra.mxu0 %v1809
    %1828 = vmatprep.subr.mxu0 0.0
    %1829 = vmatpush1.msra.mxu0 %v1808
    %1830 = vmatprep.subr.mxu0 0.0
    %1831 = vmatpush1.msra.mxu0 %v1807
    %1832 = vmatprep.subr.mxu0 0.0
    %1833 = vmatpush1.msra.mxu0 %v1806
    %1834 = vmatprep.subr.mxu0 0.0
    %1835 = vmatpush1.msra.mxu0 %v1805
    %1836 = vmatprep.subr.mxu0 0.0
    %1837 = vmatpush1.msra.mxu0 %v1804
    %1838 = vmatprep.subr.mxu0 0.0
    %1839 = vmatpush1.msra.mxu0 %v1803
    %1840 = vmatprep.subr.mxu0 0.0
    %1841 = vmatpush1.msra.mxu0 %v1802
    %1842 = vmatprep.subr.mxu0 0.0
    %1843 = vmatpush1.msra.mxu0 %v1801
    %1844 = vmatprep.subr.mxu0 0.0
    %1845 = vmatpush1.msra.mxu0 %v1800
    %1846 = vmatprep.subr.mxu0 0.0
    %1847 = vmatpush1.msra.mxu0 %v1799
    %1848 = vmatprep.subr.mxu0 0.0
    %1849 = vmatpush1.msra.mxu0 %v1798
    %1850 = vmatprep.subr.mxu0 0.0
    %1851 = vmatpush1.msra.mxu0 %v1797
    %1852 = vmatprep.subr.mxu0 0.0
    %1853 = vmatpush2.msra.mxu0 0.0
    %1854 = vmatprep.subr.mxu0 0.0
    %1855 = vmatpush2.msra.mxu0 0.0
    %1856 = vmatprep.subr.mxu0 0.0
    %1857 = vmatpush2.msra.mxu0 0.0
    %1858 = vmatprep.subr.mxu0 0.0
    %1859 = vmatpush2.msra.mxu0 0.0
    %1860 = vmatprep.subr.mxu0 0.0
    %1861 = vmatpush2.msra.mxu0 0.0
    %1862 = vmatprep.subr.mxu0 0.0
    %1863 = vmatpush2.msra.mxu0 0.0
    %1864 = vmatprep.subr.mxu0 0.0
    %1865 = vmatpush2.msra.mxu0 0.0
    %1866 = vmatprep.subr.mxu0 0.0
    %1867 = vmatpush2.msra.mxu0 0.0
    %1868 = vmatprep.subr.mxu0 0.0
    %1869 = vmatpush2.msra.mxu0 0.0
    %1870 = vmatprep.subr.mxu0 0.0
    %1871 = vmatpush2.msra.mxu0 0.0
    %1872 = vmatprep.subr.mxu0 0.0
    %1873 = vmatpush2.msra.mxu0 0.0
    %1874 = vmatprep.subr.mxu0 0.0
    %1875 = vmatpush2.msra.mxu0 0.0
    %1876 = vmatprep.subr.mxu0 0.0
    %1877 = vmatpush2.msra.mxu0 0.0
    %1878 = vmatprep.subr.mxu0 0.0
    %1879 = vmatpush2.msra.mxu0 0.0
    %1880 = vmatprep.subr.mxu0 0.0
    %1881 = vmatpush2.msra.mxu0 0.0
    %1882 = vmatprep.subr.mxu0 0.0
    %1883 = vmatpush2.msra.mxu0 0.0
    %1884 = vmatprep.mubr.f32.mxu0 0.0
    %1885 = vmatmul.mubr.f32.gmra.mxu0 %v1796
    %v1886 = vpop.f32.mrf.mxu0
    %v1887 = vadd.f32 %v1818, %v1886
    %v1888 = vpop.f32.mrf.mxu0
    %1889 = vdwg.mxu0
    %1890 = vst [vmem:[%s6] sm:$0xff] %v1887
    // Predicated region
    $region38: #{simple_lstm_forward.1} parent=1 // pred_check
      _
    $region39: #{simple_lstm_forward.1} parent=1 // pred_check_branch
      %1892 = sbr.rel (0) target = $region41
    $region40: #{simple_lstm_forward.1} parent=1 // pred_region
      _
    $region41: #{simple_lstm_forward.1} parent=1 // pred_fallthru
      _
    // Predicated region
    $region42: #{simple_lstm_forward.1} parent=1 // pred_check
      _
    $region43: #{simple_lstm_forward.1} parent=1 // pred_check_branch
      %1894 = sbr.rel (0) target = $region45
    $region44: #{simple_lstm_forward.1} parent=1 // pred_region
      _
    $region45: #{simple_lstm_forward.1} parent=1 // pred_fallthru
      _
    %1895 = vsyncpa [#allocation4], 1
    %1896 = vsyncpa [#allocation6], 1

</llo_original>
